<compile_context>
chip_gen: v6e
topology: v6e:2x2x1
jax: 0.10.0
libtpu: 0.0.40
codegen_flags: <defaults>
</compile_context>

<pallas_src>
import functools

import numpy as np
import jax
import jax.numpy as jnp
from jax.experimental import pallas as pl
from jax.experimental.pallas import tpu as pltpu


def _fused_kernel(p1_ref, w1_ref, b1_ref, w2_ref, b2_ref, w3_ref, b3_ref,
                  o_ref, *, m3):
    """One image, one C3 chunk.  Rows of p1/p2/a2 are ordered (tap3, out_pixel)."""
    f32 = jnp.float32

    # ---- layer 1 + tanh: block-diagonal w1 gives the layer-2 im2col directly ----
    p2 = jnp.tanh(jnp.dot(p1_ref[0], w1_ref[...], preferred_element_type=f32)
                  + b1_ref[...])                                   # (9*m3, 144)

    # ---- layer 2 + tanh ----
    a2 = jnp.tanh(jnp.dot(p2, w2_ref[...], preferred_element_type=f32)
                  + b2_ref[...])                                   # (9*m3, 128)

    # ---- (tap3, pixel) row blocks -> lane-aligned column blocks of the layer-3
    #      im2col matrix (each piece is a clean 128-lane slab) ----
    p3 = jnp.concatenate([a2[t * m3:(t + 1) * m3, :] for t in range(9)],
                         axis=1)                                   # (m3, 1152)

    # ---- layer 3 + tanh, lane-dense store (chunk of C3, multiple of 128) ----
    o_ref[0] = jnp.tanh(jnp.dot(p3, w3_ref[...], preferred_element_type=f32)
                        + b3_ref[...])                             # (m3, C3/nc)


def model_tanh_forward(x_nchw, params, *, c3_chunks=4):
    """x: NCHW (N, 1, H, W).  params: [(w1,b1),(w2,b2),(w3,b3)] with OIHW weights."""
    (w1, b1), (w2, b2), (w3, b3) = params
    n, cin, h0, w0 = x_nchw.shape
    assert cin == 1, "ModelTanh has Cin=1 for conv1"
    k, s = 3, 2
    oh1, ow1 = (h0 - k) // s + 1, (w0 - k) // s + 1
    oh2, ow2 = (oh1 - k) // s + 1, (ow1 - k) // s + 1
    oh3, ow3 = (oh2 - k) // s + 1, (ow2 - k) // s + 1
    assert oh3 >= 1 and ow3 >= 1
    c1, c2, c3 = w1.shape[0], w2.shape[0], w3.shape[0]
    m3 = oh3 * ow3

    assert c3 % c3_chunks == 0 and (c3 // c3_chunks) % 128 == 0, \
        "C3 chunks must be 128-lane aligned"
    cchunk = c3 // c3_chunks

    # ------- wrapper-side im2col of the raw input (tiny; one XLA gather) -------
    # Row (t3*m3 + m), col (t2*9 + t1) holds
    #   x[8*oh3 + 4*kh3 + 2*kh2 + kh1, 8*ow3 + 4*kw3 + 2*kw2 + kw1]
    # i.e. exactly the input pixel feeding layer-1 tap t1 of layer-2 tap t2 of
    # layer-3 tap t3 at layer-3 output pixel m.
    kk = np.arange(3)
    kh3, kw3, kh2, kw2, kh1, kw1 = np.meshgrid(kk, kk, kk, kk, kk, kk,
                                               indexing="ij")
    r_off = (4 * kh3 + 2 * kh2 + kh1).reshape(9, 81)   # [t3, t2*9 + t1]
    c_off = (4 * kw3 + 2 * kw2 + kw1).reshape(9, 81)
    R = 8 * np.arange(oh3)[None, :, None] + r_off[:, None, :]   # (9, oh3, 81)
    C = 8 * np.arange(ow3)[None, :, None] + c_off[:, None, :]   # (9, ow3, 81)

    xs = x_nchw[:, 0].astype(jnp.float32)                        # (N, H, W)
    p1w = xs[:, R[:, :, None, :], C[:, None, :, :]]              # (N,9,oh3,ow3,81)
    p1w = p1w.reshape(n, 9 * m3, 81)

    # ------- weights, matching the column orderings above -------
    w1r = jnp.transpose(w1, (2, 3, 1, 0)).reshape(9, c1).astype(jnp.float32)
    eye9 = jnp.eye(9, dtype=jnp.float32)
    # block-diagonal (81, 144): block t2 = w1r, so layer1 output == layer-2 im2col
    w1bd = (eye9[:, None, :, None] * w1r[None, :, None, :]).reshape(81, 9 * c1)
    b1t = jnp.tile(b1.astype(jnp.float32), 9)[None, :]           # (1, 144)

    w2r = jnp.transpose(w2, (2, 3, 1, 0)).reshape(9 * c1, c2).astype(jnp.float32)
    b2r = b2.astype(jnp.float32)[None, :]                        # (1, 128)
    w3r = jnp.transpose(w3, (2, 3, 1, 0)).reshape(9 * c2, c3).astype(jnp.float32)
    b3r = b3.astype(jnp.float32)[None, :]                        # (1, 512)

    # ------- one fused pallas_call; grid = (C3 chunk, image) -------
    out = pl.pallas_call(
        functools.partial(_fused_kernel, m3=m3),
        out_shape=jax.ShapeDtypeStruct((n, m3, c3), jnp.float32),
        grid=(c3_chunks, n),
        in_specs=[
            pl.BlockSpec((1, 9 * m3, 81), lambda j, i: (i, 0, 0)),   # p1 im2col
            pl.BlockSpec((81, 9 * c1),    lambda j, i: (0, 0)),      # w1 block-diag
            pl.BlockSpec((1, 9 * c1),     lambda j, i: (0, 0)),      # b1 tiled
            pl.BlockSpec((9 * c1, c2),    lambda j, i: (0, 0)),      # w2
            pl.BlockSpec((1, c2),         lambda j, i: (0, 0)),      # b2
            pl.BlockSpec((9 * c2, cchunk), lambda j, i: (0, j)),     # w3 chunk
            pl.BlockSpec((1, cchunk),     lambda j, i: (0, j)),      # b3 chunk
        ],
        out_specs=pl.BlockSpec((1, m3, cchunk), lambda j, i: (i, 0, j)),
        compiler_params=pltpu.CompilerParams(
            dimension_semantics=("parallel", "parallel"),
            vmem_limit_bytes=32 * 1024 * 1024),
    )(p1w, w1bd, b1t, w2r, b2r, w3r, b3r)

    out = out.reshape(n, oh3, ow3, c3)
    return jnp.transpose(out, (0, 3, 1, 2))                      # NCHW


def init_params(key):
    """Deterministic init mimicking PyTorch Conv2d default (uniform +-1/sqrt(fan_in))."""
    specs = [(1, 16, 3), (16, 128, 3), (128, 512, 3)]   # Cin, Cout, K (stride=2 fixed)
    params = []
    for (cin, cout, kk) in specs:
        key, kw_, kb_ = jax.random.split(key, 3)
        bound = 1.0 / jnp.sqrt(cin * kk * kk)
        w = jax.random.uniform(kw_, (cout, cin, kk, kk), jnp.float32, -bound, bound)
        b = jax.random.uniform(kb_, (cout,), jnp.float32, -bound, bound)
        params.append((w, b))
    return params


def reference_forward(x_nchw, params):
    # Pure-JAX reference (lax conv) for correctness checking.
    x = x_nchw
    for (w, b) in params:
        x = jax.lax.conv_general_dilated(
            x, w, window_strides=(2, 2), padding="VALID",
            dimension_numbers=("NCHW", "OIHW", "NCHW"))
        x = jnp.tanh(x + b[None, :, None, None])
    return x


if __name__ == "__main__":
    key = jax.random.PRNGKey(0)
    key, kx = jax.random.split(key)
    # Small, module-consistent shapes: batch=2, the module's 1x56x56 input.
    x = jax.random.normal(kx, (2, 1, 56, 56), jnp.float32)

    params = init_params(key)

    fwd = jax.jit(model_tanh_forward)
    out = jax.block_until_ready(fwd(x, params))
    assert out.shape == (2, 512, 6, 6), out.shape

    ref = jax.block_until_ready(reference_forward(x, params))
    max_err = float(jnp.max(jnp.abs(out - ref)))
    assert max_err < 2e-3, f"max_err={max_err}"

    print("KERNEL_OK")
</pallas_src>

<mosaic_0001>
module attributes {stable_mosaic.version = 11 : i64} {
  func.func @_fused_kernel(%arg0: i32, %arg1: i32, %arg2: memref<1x324x81xf32, #tpu.memory_space<vmem>>, %arg3: memref<81x144xf32, #tpu.memory_space<vmem>>, %arg4: memref<1x144xf32, #tpu.memory_space<vmem>>, %arg5: memref<144x128xf32, #tpu.memory_space<vmem>>, %arg6: memref<1x128xf32, #tpu.memory_space<vmem>>, %arg7: memref<1152x128xf32, #tpu.memory_space<vmem>>, %arg8: memref<1x128xf32, #tpu.memory_space<vmem>>, %arg9: memref<1x36x128xf32, #tpu.memory_space<vmem>>) attributes {dimension_semantics = [#tpu.dimension_semantics<parallel>, #tpu.dimension_semantics<parallel>], iteration_bounds = array<i64: 4, 2>, scalar_prefetch = 0 : i64, scratch_operands = 0 : i64, tpu.core_type = #tpu.core_type<tc>, window_params = [{transform_indices = @transform_0, window_bounds = array<i64: 1, 324, 81>}, {pipeline_mode = #tpu.pipeline_mode<synchronous>, transform_indices = @transform_1, window_bounds = array<i64: 81, 144>}, {pipeline_mode = #tpu.pipeline_mode<synchronous>, transform_indices = @transform_2, window_bounds = array<i64: 1, 144>}, {pipeline_mode = #tpu.pipeline_mode<synchronous>, transform_indices = @transform_3, window_bounds = array<i64: 144, 128>}, {pipeline_mode = #tpu.pipeline_mode<synchronous>, transform_indices = @transform_4, window_bounds = array<i64: 1, 128>}, {transform_indices = @transform_5, window_bounds = array<i64: 1152, 128>}, {transform_indices = @transform_6, window_bounds = array<i64: 1, 128>}, {transform_indices = @transform_7, window_bounds = array<i64: 1, 36, 128>}]} {
    %c0 = arith.constant 0 : index
    %c0_0 = arith.constant 0 : index
    %c0_1 = arith.constant 0 : index
    %0 = vector.load %arg2[%c0, %c0_0, %c0_1] : memref<1x324x81xf32, #tpu.memory_space<vmem>>, vector<1x324x81xf32>
    %1 = vector.shape_cast %0 : vector<1x324x81xf32> to vector<324x81xf32>
    %c0_2 = arith.constant 0 : index
    %c0_3 = arith.constant 0 : index
    %2 = vector.load %arg3[%c0_2, %c0_3] : memref<81x144xf32, #tpu.memory_space<vmem>>, vector<81x144xf32>
    %cst = arith.constant dense<0.000000e+00> : vector<324x144xf32>
    %3 = tpu.matmul %1, %2, %cst {dimension_numbers = #tpu.dot_dimension_numbers<[1], [0], [0], [1], [0, 0, 1, 1], [], []>} : vector<324x81xf32>, vector<81x144xf32>, vector<324x144xf32> -> vector<324x144xf32>
    %c0_4 = arith.constant 0 : index
    %c0_5 = arith.constant 0 : index
    %4 = vector.load %arg4[%c0_4, %c0_5] : memref<1x144xf32, #tpu.memory_space<vmem>>, vector<1x144xf32>
    %5 = vector.broadcast %4 : vector<1x144xf32> to vector<324x144xf32>
    %6 = arith.addf %3, %5 : vector<324x144xf32>
    %7 = math.tanh %6 : vector<324x144xf32>
    %c0_6 = arith.constant 0 : index
    %c0_7 = arith.constant 0 : index
    %8 = vector.load %arg5[%c0_6, %c0_7] : memref<144x128xf32, #tpu.memory_space<vmem>>, vector<144x128xf32>
    %cst_8 = arith.constant dense<0.000000e+00> : vector<324x128xf32>
    %9 = tpu.matmul %7, %8, %cst_8 {dimension_numbers = #tpu.dot_dimension_numbers<[1], [0], [0], [1], [0, 0, 1, 1], [], []>} : vector<324x144xf32>, vector<144x128xf32>, vector<324x128xf32> -> vector<324x128xf32>
    %c0_9 = arith.constant 0 : index
    %c0_10 = arith.constant 0 : index
    %10 = vector.load %arg6[%c0_9, %c0_10] : memref<1x128xf32, #tpu.memory_space<vmem>>, vector<1x128xf32>
    %11 = vector.broadcast %10 : vector<1x128xf32> to vector<324x128xf32>
    %12 = arith.addf %9, %11 : vector<324x128xf32>
    %13 = math.tanh %12 : vector<324x128xf32>
    %14 = vector.extract_strided_slice %13 {offsets = [0, 0], sizes = [36, 128], strides = [1, 1]} : vector<324x128xf32> to vector<36x128xf32>
    %15 = vector.extract_strided_slice %13 {offsets = [36, 0], sizes = [36, 128], strides = [1, 1]} : vector<324x128xf32> to vector<36x128xf32>
    %16 = vector.extract_strided_slice %13 {offsets = [72, 0], sizes = [36, 128], strides = [1, 1]} : vector<324x128xf32> to vector<36x128xf32>
    %17 = vector.extract_strided_slice %13 {offsets = [108, 0], sizes = [36, 128], strides = [1, 1]} : vector<324x128xf32> to vector<36x128xf32>
    %18 = vector.extract_strided_slice %13 {offsets = [144, 0], sizes = [36, 128], strides = [1, 1]} : vector<324x128xf32> to vector<36x128xf32>
    %19 = vector.extract_strided_slice %13 {offsets = [180, 0], sizes = [36, 128], strides = [1, 1]} : vector<324x128xf32> to vector<36x128xf32>
    %20 = vector.extract_strided_slice %13 {offsets = [216, 0], sizes = [36, 128], strides = [1, 1]} : vector<324x128xf32> to vector<36x128xf32>
    %21 = vector.extract_strided_slice %13 {offsets = [252, 0], sizes = [36, 128], strides = [1, 1]} : vector<324x128xf32> to vector<36x128xf32>
    %22 = vector.extract_strided_slice %13 {offsets = [288, 0], sizes = [36, 128], strides = [1, 1]} : vector<324x128xf32> to vector<36x128xf32>
    %23 = tpu.concatenate %14, %15, %16, %17, %18, %19, %20, %21, %22 in 1 : vector<36x128xf32>, vector<36x128xf32>, vector<36x128xf32>, vector<36x128xf32>, vector<36x128xf32>, vector<36x128xf32>, vector<36x128xf32>, vector<36x128xf32>, vector<36x128xf32> -> vector<36x1152xf32>
    %c0_11 = arith.constant 0 : index
    %c0_12 = arith.constant 0 : index
    %24 = vector.load %arg7[%c0_11, %c0_12] : memref<1152x128xf32, #tpu.memory_space<vmem>>, vector<1152x128xf32>
    %cst_13 = arith.constant dense<0.000000e+00> : vector<36x128xf32>
    %25 = tpu.matmul %23, %24, %cst_13 {dimension_numbers = #tpu.dot_dimension_numbers<[1], [0], [0], [1], [0, 0, 1, 1], [], []>} : vector<36x1152xf32>, vector<1152x128xf32>, vector<36x128xf32> -> vector<36x128xf32>
    %c0_14 = arith.constant 0 : index
    %c0_15 = arith.constant 0 : index
    %26 = vector.load %arg8[%c0_14, %c0_15] : memref<1x128xf32, #tpu.memory_space<vmem>>, vector<1x128xf32>
    %27 = vector.broadcast %26 : vector<1x128xf32> to vector<36x128xf32>
    %28 = arith.addf %25, %27 : vector<36x128xf32>
    %29 = math.tanh %28 : vector<36x128xf32>
    %c0_16 = arith.constant 0 : index
    %c0_17 = arith.constant 0 : index
    %c0_18 = arith.constant 0 : index
    %30 = vector.load %arg9[%c0_16, %c0_17, %c0_18] : memref<1x36x128xf32, #tpu.memory_space<vmem>>, vector<1x36x128xf32>
    %31 = vector.shape_cast %30 : vector<1x36x128xf32> to vector<36x128xf32>
    %32 = vector.shape_cast %29 : vector<36x128xf32> to vector<1x36x128xf32>
    tpu.vector_store %arg9[%c0_16, %c0_17, %c0_18], %32 {strides = array<i32>} : memref<1x36x128xf32, #tpu.memory_space<vmem>>, vector<1x36x128xf32>,
    return
  }
  func.func @transform_0(%arg0: i32, %arg1: i32) -> (i32, i32, i32) {
    %c0_i32 = arith.constant 0 : i32
    %c0_i32_0 = arith.constant 0 : i32
    %c0_i32_1 = arith.constant 0 : i32
    return %arg1, %c0_i32, %c0_i32_0 : i32, i32, i32
  }
  func.func @transform_1(%arg0: i32, %arg1: i32) -> (i32, i32) {
    %c0_i32 = arith.constant 0 : i32
    %c0_i32_0 = arith.constant 0 : i32
    %c0_i32_1 = arith.constant 0 : i32
    return %c0_i32, %c0_i32_0 : i32, i32
  }
  func.func @transform_2(%arg0: i32, %arg1: i32) -> (i32, i32) {
    %c0_i32 = arith.constant 0 : i32
    %c0_i32_0 = arith.constant 0 : i32
    %c0_i32_1 = arith.constant 0 : i32
    return %c0_i32, %c0_i32_0 : i32, i32
  }
  func.func @transform_3(%arg0: i32, %arg1: i32) -> (i32, i32) {
    %c0_i32 = arith.constant 0 : i32
    %c0_i32_0 = arith.constant 0 : i32
    %c0_i32_1 = arith.constant 0 : i32
    return %c0_i32, %c0_i32_0 : i32, i32
  }
  func.func @transform_4(%arg0: i32, %arg1: i32) -> (i32, i32) {
    %c0_i32 = arith.constant 0 : i32
    %c0_i32_0 = arith.constant 0 : i32
    %c0_i32_1 = arith.constant 0 : i32
    return %c0_i32, %c0_i32_0 : i32, i32
  }
  func.func @transform_5(%arg0: i32, %arg1: i32) -> (i32, i32) {
    %c0_i32 = arith.constant 0 : i32
    %c0_i32_0 = arith.constant 0 : i32
    return %c0_i32, %arg0 : i32, i32
  }
  func.func @transform_6(%arg0: i32, %arg1: i32) -> (i32, i32) {
    %c0_i32 = arith.constant 0 : i32
    %c0_i32_0 = arith.constant 0 : i32
    return %c0_i32, %arg0 : i32, i32
  }
  func.func @transform_7(%arg0: i32, %arg1: i32) -> (i32, i32, i32) {
    %c0_i32 = arith.constant 0 : i32
    %c0_i32_0 = arith.constant 0 : i32
    return %arg1, %c0_i32, %arg0 : i32, i32, i32
  }
}

</mosaic_0001>

<llo_original>
// kernel: mul.11
$region0: #{mul.11}
  %s0 = inlined_call_operand.vmem [shape: f32[3,3,16], index: 0, kind: input, shape index: {}]
  %s1 = inlined_call_operand.vmem [shape: f32[9,16], index: 1, kind: output, shape index: {}]
  $region1: #{mul.11} parent=0
    #allocation0 [shape = 'u8[12288]{0}', space=vmem, size = 0x3000, scoped, tag = 'scoped mem for input reshape']
    %s3 = sshll.u32 1, 4
    %s4 = ssub.s32 %s3, 1
    %s5 = smul.addr 4, 2
    %s6 = scalar_lea.vmem %s0, %s5
    %v7 = vld [vmem:[%s6] sm:%s4]
    %s8 = scalar_lea.vmem [#allocation0], 16
    %9 = vst [vmem:[%s8] sm:%s4] %v7
    %s10 = scalar_lea.vmem %s0, 4
    %v11 = vld [vmem:[%s10] sm:%s4]
    %s12 = scalar_lea.vmem [#allocation0], 8
    %13 = vst [vmem:[%s12] sm:%s4] %v11
    %v14 = vld [vmem:[%s0] sm:%s4]
    %15 = vst [vmem:[#allocation0] sm:%s4] %v14
    %v16 = vld [vmem:[#allocation0] sm:$0x7]
    %vm17 = vcmask 130048
    %18 = vst.msk [vmem:[%s1] sm:$0x7] %vm17, %v16
    %s19 = scalar_lea.vmem [#allocation0], 8
    %v20 = vld [vmem:[%s19] sm:$0x7]
    %vm21 = vcmask 130048
    %s22 = scalar_lea.vmem %s1, 3
    %23 = vst.msk [vmem:[%s22] sm:$0x7] %vm21, %v20
    %s24 = scalar_lea.vmem [#allocation0], 16
    %v25 = vld [vmem:[%s24] sm:$0x7]
    %vm26 = vcmask 130048
    %s27 = scalar_lea.vmem %s1, 6
    %28 = vst.msk [vmem:[%s27] sm:$0x7] %vm26, %v25

// kernel: tile.8
$region0: #{tile.8}
  #allocation0 [shape = 's32[1]{0}', space=sflag, size = 0x4, scoped, tag = 'scoped memory for tile.8']
  %s0 = inlined_call_operand.vmem [shape: f32[16], index: 0, kind: input, shape index: {}]
  %s1 = inlined_call_operand.vmem [shape: f32[9,16], index: 1, kind: output, shape index: {}]
  // Predicated region
  $region2: #{tile.8} parent=0 // pred_check
    _
  $region3: #{tile.8} parent=0 // pred_check_branch
    %3 = sbr.rel (0) target = $region5
  $region4: #{tile.8} parent=0 // pred_region
    _
  $region5: #{tile.8} parent=0 // pred_fallthru
    _
  %v4 = vld [vmem:[%s0] ss:$0 sm:$0xff]
  %5 = vst [vmem:[%s1] sm:$0xff] %v4
  %s6 = scalar_lea.vmem %s1, 8
  %7 = vst [vmem:[%s6] sm:$0xff] %v4

// kernel: tile.9
$region0: #{tile.9}
  %s0 = inlined_call_operand.vmem [shape: f32[9,16], index: 0, kind: input, shape index: {}]
  %s1 = inlined_call_operand.vmem [shape: f32[1,144], index: 1, kind: output, shape index: {}]
  $region1: #{tile.9} parent=0
    #allocation0 [shape = 'u8[8192]{0}', space=vmem, size = 0x2000, scoped, tag = 'scoped mem for output reshape']
    %s2 = smov 3
    %v3 = vld [vmem:[%s0] ss:$8 sm:%s2]
    %vm4 = vcmask 130048
    %5 = vst.msk [vmem:[#allocation0] ss:$8 sm:$0x3] %vm4, %v3
    %s6 = scalar_lea.vmem %s0, 7
    %v7 = vld [vmem:[%s6] sm:$0x1]
    %8 = vrot.lane.b32.xlu0 %v7, 112
    %v9 = vpop.permute.xlu0 %8
    %vm10 = vcmask 1048448
    %11 = vst.msk [vmem:[#allocation0] sm:$0x1] %vm10, %v9
    %s12 = scalar_lea.vmem %s0, 6
    %v13 = vld [vmem:[%s12] sm:$0x1]
    %14 = vrot.lane.b32.xlu0 %v13, 96
    %v15 = vpop.permute.xlu0 %14
    %vm16 = vcmask 917248
    %17 = vst.msk [vmem:[#allocation0] sm:$0x1] %vm16, %v15
    %s18 = scalar_lea.vmem %s0, 5
    %v19 = vld [vmem:[%s18] sm:$0x1]
    %20 = vrot.lane.b32.xlu0 %v19, 80
    %v21 = vpop.permute.xlu0 %20
    %vm22 = vcmask 786048
    %23 = vst.msk [vmem:[#allocation0] sm:$0x1] %vm22, %v21
    %s24 = scalar_lea.vmem %s0, 4
    %v25 = vld [vmem:[%s24] sm:$0x1]
    %26 = vrot.lane.b32.xlu0 %v25, 64
    %v27 = vpop.permute.xlu0 %26
    %vm28 = vcmask 654848
    %29 = vst.msk [vmem:[#allocation0] sm:$0x1] %vm28, %v27
    %s30 = scalar_lea.vmem %s0, 3
    %v31 = vld [vmem:[%s30] sm:$0x1]
    %32 = vrot.lane.b32.xlu0 %v31, 48
    %v33 = vpop.permute.xlu0 %32
    %vm34 = vcmask 523648
    %35 = vst.msk [vmem:[#allocation0] sm:$0x1] %vm34, %v33
    %s36 = scalar_lea.vmem %s0, 2
    %v37 = vld [vmem:[%s36] sm:$0x1]
    %38 = vrot.lane.b32.xlu0 %v37, 32
    %v39 = vpop.permute.xlu0 %38
    %vm40 = vcmask 392448
    %41 = vst.msk [vmem:[#allocation0] sm:$0x1] %vm40, %v39
    %s42 = scalar_lea.vmem %s0, 1
    %v43 = vld [vmem:[%s42] sm:$0x1]
    %44 = vrot.lane.b32.xlu0 %v43, 16
    %v45 = vpop.permute.xlu0 %44
    %vm46 = vcmask 261248
    %47 = vst.msk [vmem:[#allocation0] sm:$0x1] %vm46, %v45
    %s49 = sshll.u32 1, 1
    %s50 = ssub.s32 %s49, 1
    %v52 = vld [vmem:[#allocation0] sm:%s50]
    %s53 = sshll.u32 1, 1
    %s54 = ssub.s32 %s53, 1
    %55 = vst [vmem:[%s1] sm:%s54] %v52
    %s56 = scalar_lea.vmem [#allocation0], 8
    %v57 = vld [vmem:[%s56] sm:%s50]
    %s58 = sshll.u32 1, 1
    %s59 = ssub.s32 %s58, 1
    %s60 = scalar_lea.vmem %s1, 1
    %61 = vst [vmem:[%s60] sm:%s59] %v57

// kernel: model_tanh_forward.1
$region0: #{model_tanh_forward.1}
  #allocation0 [shape = 'u32[]', space=smem, size = 0x4, offset = 0x4, fixed_abs, tag = 'smem constant byte address 0x4 - core index']
  #allocation1 [shape = 'u32[144,128]{1,0:T(1,128)}', space=vmem, size = 0x12000, scoped, tag = 'internal scratch']
  %s0 = inlined_call_operand.vmem [shape: f32[2,324,81], index: 0, kind: input, shape index: {}]
  %s1 = inlined_call_operand.vmem [shape: f32[81,144], index: 1, kind: input, shape index: {}]
  %s2 = inlined_call_operand.vmem [shape: f32[1,144], index: 2, kind: input, shape index: {}]
  %s3 = inlined_call_operand.vmem [shape: f32[144,128], index: 3, kind: input, shape index: {}]
  %s4 = inlined_call_operand.vmem [shape: f32[1,128], index: 4, kind: input, shape index: {}]
  %s5 = inlined_call_operand.vmem [shape: f32[1152,512], index: 5, kind: input, shape index: {}]
  %s6 = inlined_call_operand.vmem [shape: f32[1,512], index: 6, kind: input, shape index: {}]
  %s7 = inlined_call_operand.vmem [shape: f32[2,36,512], index: 7, kind: output, shape index: {}]
  %s8 = sld [smem:[#allocation0]]
  $region133: #{model_tanh_forward.1} parent=0
    _
  %s10 = ssub.s32 1, %s8
  %s11 = scalar_select 0, %s10, %s8
  $region1: #{model_tanh_forward.1} parent=0
    #allocation2 [shape = 'u8[1179648]{0}', space=vmem, size = 0x120000, scoped, tag = 'input window, operand 5']
    #allocation3 [shape = 'u8[40960]{0}', space=vmem, size = 0xa000, scoped, tag = 'output window, operand 0']
    loop: start=0, step=1, limit=10
    $region2: #{model_tanh_forward.1} parent=1 // loop_pre_header
      _
    $region3: #{model_tanh_forward.1} parent=1 // loop_header
      %s13 = sphi 0, %s17
      %p14 = scmp.ge.s32.totalorder %s13, 10
      %s20 = sphi 0, %s32
      %s21 = sphi 0, %s28
      %s22 = sphi 0, %s20
      %s23 = sphi 0, %s21
      %s24 = sphi 0, %s22
      %s25 = sphi 0, %s23
      %s35 = sphi 0, %s37
      %s38 = sphi 0, %s35
      %s39 = sphi 0, %s38
      %s55 = sphi 0, %s39
      %s59 = sphi 0, %s59
      %s61 = sphi 0, %s59
      %s62 = sphi 0, %s61
      %s76 = sphi 0, %s62
      %s80 = sphi 0, %s80
      %s82 = sphi 0, %s80
      %s83 = sphi 0, %s82
      %s97 = sphi 0, %s83
      %s101 = sphi 0, %s101
      %s103 = sphi 0, %s101
      %s104 = sphi 0, %s103
      %s118 = sphi 0, %s104
      %s122 = sphi 0, %s122
      %s124 = sphi 0, %s122
      %s125 = sphi 0, %s124
      %s139 = sphi 0, %s125
      %s145 = sphi 0, %s147
      %s148 = sphi 0, %s145
      %s149 = sphi 0, %s148
      %s165 = sphi 0, %s149
      %s171 = sphi 0, %s173
      %s174 = sphi 0, %s171
      %s175 = sphi 0, %s174
      %s191 = sphi 0, %s175
      %s199 = sphi 0, %s201
      %s202 = sphi 0, %s199
      %s203 = sphi 0, %s202
      %s219 = sphi 0, %s203
    $region4: #{model_tanh_forward.1} parent=1 // loop_header_branch
      %16 = sbr.rel (%p14) target = $region8
    $region5: #{model_tanh_forward.1} parent=1 // loop_body
      %s18 = ssub.s32 %s13, 1
      %s19 = ssub.s32 %s13, 2
      %s26 = sadd.s32 1, %s21
      %p27 = scmp.ge.s32.totalorder %s26, 2
      %s28 = scalar_select %p27, 0, %s26
      %s29 = sadd.s32 1, %s20
      %s30 = scalar_select %p27, %s29, %s20
      %p31 = scmp.ge.s32.totalorder %s30, 4
      %s32 = scalar_select %p31, 0, %s30
      %s33 = ssub.s32 %s21, %s28
      %p34 = scmp.eq.s32.totalorder %s33, 0
      %s36 = sadd.s32 %s35, 1
      %s37 = scalar_select %p34, %s35, %s36
      %p40 = pneg %p34
      %p41 = scmp.eq.s32.totalorder %s13, 7
      %p42 = por %p40, %p41
      %p43 = scmp.ne.s32.totalorder %s35, %s38
      %p44 = scmp.eq.s32.totalorder %s13, 0
      %p45 = por %p43, %p44
      %p46 = scmp.ne.s32.totalorder %s35, %s38
      %p47 = scmp.eq.s32.totalorder %s18, 7
      %p48 = por %p46, %p47
      %p49 = scmp.ne.s32.totalorder %s38, %s39
      %p50 = scmp.eq.s32.totalorder %s18, 0
      %p51 = por %p49, %p50
      %p52 = scmp.ne.s32.totalorder %s38, %s39
      %p53 = scmp.eq.s32.totalorder %s19, 7
      %p54 = por %p52, %p53
      %p56 = scmp.ne.s32.totalorder %s39, %s55
      %p57 = scmp.eq.s32.totalorder %s19, 0
      %p58 = por %p56, %p57
      %s60 = sadd.s32 %s59, 1
      %p63 = scmp.eq.s32.totalorder %s13, 7
      %p64 = scmp.ne.s32.totalorder %s59, %s61
      %p65 = scmp.eq.s32.totalorder %s13, 0
      %p66 = por %p64, %p65
      %p67 = scmp.ne.s32.totalorder %s59, %s61
      %p68 = scmp.eq.s32.totalorder %s18, 7
      %p69 = por %p67, %p68
      %p70 = scmp.ne.s32.totalorder %s61, %s62
      %p71 = scmp.eq.s32.totalorder %s18, 0
      %p72 = por %p70, %p71
      %p73 = scmp.ne.s32.totalorder %s61, %s62
      %p74 = scmp.eq.s32.totalorder %s19, 7
      %p75 = por %p73, %p74
      %p77 = scmp.ne.s32.totalorder %s62, %s76
      %p78 = scmp.eq.s32.totalorder %s19, 0
      %p79 = por %p77, %p78
      %s81 = sadd.s32 %s80, 1
      %p84 = scmp.eq.s32.totalorder %s13, 7
      %p85 = scmp.ne.s32.totalorder %s80, %s82
      %p86 = scmp.eq.s32.totalorder %s13, 0
      %p87 = por %p85, %p86
      %p88 = scmp.ne.s32.totalorder %s80, %s82
      %p89 = scmp.eq.s32.totalorder %s18, 7
      %p90 = por %p88, %p89
      %p91 = scmp.ne.s32.totalorder %s82, %s83
      %p92 = scmp.eq.s32.totalorder %s18, 0
      %p93 = por %p91, %p92
      %p94 = scmp.ne.s32.totalorder %s82, %s83
      %p95 = scmp.eq.s32.totalorder %s19, 7
      %p96 = por %p94, %p95
      %p98 = scmp.ne.s32.totalorder %s83, %s97
      %p99 = scmp.eq.s32.totalorder %s19, 0
      %p100 = por %p98, %p99
      %s102 = sadd.s32 %s101, 1
      %p105 = scmp.eq.s32.totalorder %s13, 7
      %p106 = scmp.ne.s32.totalorder %s101, %s103
      %p107 = scmp.eq.s32.totalorder %s13, 0
      %p108 = por %p106, %p107
      %p109 = scmp.ne.s32.totalorder %s101, %s103
      %p110 = scmp.eq.s32.totalorder %s18, 7
      %p111 = por %p109, %p110
      %p112 = scmp.ne.s32.totalorder %s103, %s104
      %p113 = scmp.eq.s32.totalorder %s18, 0
      %p114 = por %p112, %p113
      %p115 = scmp.ne.s32.totalorder %s103, %s104
      %p116 = scmp.eq.s32.totalorder %s19, 7
      %p117 = por %p115, %p116
      %p119 = scmp.ne.s32.totalorder %s104, %s118
      %p120 = scmp.eq.s32.totalorder %s19, 0
      %p121 = por %p119, %p120
      %s123 = sadd.s32 %s122, 1
      %p126 = scmp.eq.s32.totalorder %s13, 7
      %p127 = scmp.ne.s32.totalorder %s122, %s124
      %p128 = scmp.eq.s32.totalorder %s13, 0
      %p129 = por %p127, %p128
      %p130 = scmp.ne.s32.totalorder %s122, %s124
      %p131 = scmp.eq.s32.totalorder %s18, 7
      %p132 = por %p130, %p131
      %p133 = scmp.ne.s32.totalorder %s124, %s125
      %p134 = scmp.eq.s32.totalorder %s18, 0
      %p135 = por %p133, %p134
      %p136 = scmp.ne.s32.totalorder %s124, %s125
      %p137 = scmp.eq.s32.totalorder %s19, 7
      %p138 = por %p136, %p137
      %p140 = scmp.ne.s32.totalorder %s125, %s139
      %p141 = scmp.eq.s32.totalorder %s19, 0
      %p142 = por %p140, %p141
      %s143 = ssub.s32 %s20, %s32
      %p144 = scmp.eq.s32.totalorder %s143, 0
      %s146 = sadd.s32 %s145, 1
      %s147 = scalar_select %p144, %s145, %s146
      %p150 = pneg %p144
      %p151 = scmp.eq.s32.totalorder %s13, 7
      %p152 = por %p150, %p151
      %p153 = scmp.ne.s32.totalorder %s145, %s148
      %p154 = scmp.eq.s32.totalorder %s13, 0
      %p155 = por %p153, %p154
      %p156 = scmp.ne.s32.totalorder %s145, %s148
      %p157 = scmp.eq.s32.totalorder %s18, 7
      %p158 = por %p156, %p157
      %p159 = scmp.ne.s32.totalorder %s148, %s149
      %p160 = scmp.eq.s32.totalorder %s18, 0
      %p161 = por %p159, %p160
      %p162 = scmp.ne.s32.totalorder %s148, %s149
      %p163 = scmp.eq.s32.totalorder %s19, 7
      %p164 = por %p162, %p163
      %p166 = scmp.ne.s32.totalorder %s149, %s165
      %p167 = scmp.eq.s32.totalorder %s19, 0
      %p168 = por %p166, %p167
      %s169 = ssub.s32 %s20, %s32
      %p170 = scmp.eq.s32.totalorder %s169, 0
      %s172 = sadd.s32 %s171, 1
      %s173 = scalar_select %p170, %s171, %s172
      %p176 = pneg %p170
      %p177 = scmp.eq.s32.totalorder %s13, 7
      %p178 = por %p176, %p177
      %p179 = scmp.ne.s32.totalorder %s171, %s174
      %p180 = scmp.eq.s32.totalorder %s13, 0
      %p181 = por %p179, %p180
      %p182 = scmp.ne.s32.totalorder %s171, %s174
      %p183 = scmp.eq.s32.totalorder %s18, 7
      %p184 = por %p182, %p183
      %p185 = scmp.ne.s32.totalorder %s174, %s175
      %p186 = scmp.eq.s32.totalorder %s18, 0
      %p187 = por %p185, %p186
      %p188 = scmp.ne.s32.totalorder %s174, %s175
      %p189 = scmp.eq.s32.totalorder %s19, 7
      %p190 = por %p188, %p189
      %p192 = scmp.ne.s32.totalorder %s175, %s191
      %p193 = scmp.eq.s32.totalorder %s19, 0
      %p194 = por %p192, %p193
      %s195 = ssub.s32 %s21, %s28
      %s196 = ssub.s32 %s20, %s32
      %s197 = sor.u32 %s195, %s196
      %p198 = scmp.eq.s32.totalorder %s197, 0
      %s200 = sadd.s32 %s199, 1
      %s201 = scalar_select %p198, %s199, %s200
      %p204 = pneg %p198
      %p205 = scmp.eq.s32.totalorder %s13, 7
      %p206 = por %p204, %p205
      %p207 = scmp.ne.s32.totalorder %s199, %s202
      %p208 = scmp.eq.s32.totalorder %s13, 0
      %p209 = por %p207, %p208
      %p210 = scmp.ne.s32.totalorder %s199, %s202
      %p211 = scmp.eq.s32.totalorder %s18, 7
      %p212 = por %p210, %p211
      %p213 = scmp.ne.s32.totalorder %s202, %s203
      %p214 = scmp.eq.s32.totalorder %s18, 0
      %p215 = por %p213, %p214
      %p216 = scmp.ne.s32.totalorder %s202, %s203
      %p217 = scmp.eq.s32.totalorder %s19, 7
      %p218 = por %p216, %p217
      %p220 = scmp.ne.s32.totalorder %s203, %s219
      %p221 = scmp.eq.s32.totalorder %s19, 0
      %p222 = por %p220, %p221
      %p223 = scmp.le.s32.totalorder 1, %s13
      %p224 = scmp.lt.s32.totalorder %s13, 9
      %p225 = pnand %p223, %p224
      %p226 = pneg %p225
      // Predicated region
      $region9: #{model_tanh_forward.1} parent=5 // pred_check
        _
      $region10: #{model_tanh_forward.1} parent=5 // pred_check_branch
        %228 = sbr.rel (%p225) target = $region12
      $region11: #{model_tanh_forward.1} parent=5 // pred_region
        %s229 = ssub.s32 %s13, 1
        // Predicated region
        $region13: #{model_tanh_forward.1} parent=11 // pred_check
          %p230 = pneg %p72
        $region14: #{model_tanh_forward.1} parent=11 // pred_check_branch
          %232 = sbr.rel (%p230) target = $region16
        $region15: #{model_tanh_forward.1} parent=11 // pred_region
          _
        $region16: #{model_tanh_forward.1} parent=11 // pred_fallthru
          _
        // Predicated region
        $region17: #{model_tanh_forward.1} parent=11 // pred_check
          %p233 = pneg %p93
        $region18: #{model_tanh_forward.1} parent=11 // pred_check_branch
          %235 = sbr.rel (%p233) target = $region20
        $region19: #{model_tanh_forward.1} parent=11 // pred_region
          _
        $region20: #{model_tanh_forward.1} parent=11 // pred_fallthru
          _
        // Predicated region
        $region21: #{model_tanh_forward.1} parent=11 // pred_check
          %p236 = pneg %p114
        $region22: #{model_tanh_forward.1} parent=11 // pred_check_branch
          %238 = sbr.rel (%p236) target = $region24
        $region23: #{model_tanh_forward.1} parent=11 // pred_region
          _
        $region24: #{model_tanh_forward.1} parent=11 // pred_fallthru
          _
        // Predicated region
        $region25: #{model_tanh_forward.1} parent=11 // pred_check
          %p239 = pneg %p135
        $region26: #{model_tanh_forward.1} parent=11 // pred_check_branch
          %241 = sbr.rel (%p239) target = $region28
        $region27: #{model_tanh_forward.1} parent=11 // pred_region
          _
        $region28: #{model_tanh_forward.1} parent=11 // pred_fallthru
          _
      $region12: #{model_tanh_forward.1} parent=5 // pred_fallthru
        _
      %p242 = scmp.lt.s32.totalorder %s13, 8
      // Predicated region
      $region29: #{model_tanh_forward.1} parent=5 // pred_check
        %p243 = pneg %p242
      $region30: #{model_tanh_forward.1} parent=5 // pred_check_branch
        %245 = sbr.rel (%p243) target = $region32
      $region31: #{model_tanh_forward.1} parent=5 // pred_region
        // Predicated region
        $region33: #{model_tanh_forward.1} parent=31 // pred_check
          %p246 = pneg %p45
        $region34: #{model_tanh_forward.1} parent=31 // pred_check_branch
          %248 = sbr.rel (%p246) target = $region36
        $region35: #{model_tanh_forward.1} parent=31 // pred_region
          %p249 = scmp.lt.s32.totalorder %s21, 1
          %s250 = scalar_select %p249, %s21, 1
          %s251 = smul.addr %s250, 41
          %s252 = smul.addr %s251, 8
          %s253 = scalar_lea.vmem %s0, %s252
        $region36: #{model_tanh_forward.1} parent=31 // pred_fallthru
          _
        // Predicated region
        $region37: #{model_tanh_forward.1} parent=31 // pred_check
          %p254 = pneg %p155
        $region38: #{model_tanh_forward.1} parent=31 // pred_check_branch
          %256 = sbr.rel (%p254) target = $region40
        $region39: #{model_tanh_forward.1} parent=31 // pred_region
          %s257 = sand.u32 %s145, 1
          %s258 = sand.u32 %s145, 1
          %s259 = smul.addr %s258, 1152
          %s260 = scalar_lea.vmem [#allocation2], %s259
          %s261 = smul.addr %s20, 8
          %s262 = scalar_lea.vmem %s5, %s261
          // Predicated region
          $region41: #{model_tanh_forward.1} parent=39 // pred_check
            _
          $region42: #{model_tanh_forward.1} parent=39 // pred_check_branch
            %264 = sbr.rel (0) target = $region44
          $region43: #{model_tanh_forward.1} parent=39 // pred_region
            // Predicated region
            $region45: #{model_tanh_forward.1} parent=43 // pred_check
              _
            $region46: #{model_tanh_forward.1} parent=43 // pred_check_branch
              %266 = sbr.rel (0) target = $region48
            $region47: #{model_tanh_forward.1} parent=43 // pred_region
              // Predicated region
              $region60: #{model_tanh_forward.1} parent=47 // pred_check
                _
              $region61: #{model_tanh_forward.1} parent=47 // pred_check_branch
                %568 = sbr.rel (0) target = $region63
              $region62: #{model_tanh_forward.1} parent=47 // pred_region
                loop: start=0, step=1, limit=1
                $region64: #{model_tanh_forward.1} parent=62 // loop_pre_header
                  _
                $region65: #{model_tanh_forward.1} parent=62 // loop_header
                  %s570 = sphi 0, %s574
                  %p571 = scmp.ge.s32.totalorder %s570, 1
                  %s575 = sphi %s262, %s262
                  %s576 = sphi %s260, %s260
                $region66: #{model_tanh_forward.1} parent=62 // loop_header_branch
                  %573 = sbr.rel (%p571) target = $region70
                $region67: #{model_tanh_forward.1} parent=62 // loop_body
                  %v577 = vld [vmem:[%s575] sm:$0xff]
                  %578 = vst [vmem:[%s576] sm:$0xff] %v577
                  %v579 = vld [vmem:[%s575 + $0x20] sm:$0xff]
                  %580 = vst [vmem:[%s576 + $0x8] sm:$0xff] %v579
                  %v581 = vld [vmem:[%s575 + $0x40] sm:$0xff]
                  %582 = vst [vmem:[%s576 + $0x10] sm:$0xff] %v581
                  %v583 = vld [vmem:[%s575 + $0x60] sm:$0xff]
                  %584 = vst [vmem:[%s576 + $0x18] sm:$0xff] %v583
                  %v585 = vld [vmem:[%s575 + $0x80] sm:$0xff]
                  %586 = vst [vmem:[%s576 + $0x20] sm:$0xff] %v585
                  %v587 = vld [vmem:[%s575 + $0xa0] sm:$0xff]
                  %588 = vst [vmem:[%s576 + $0x28] sm:$0xff] %v587
                  %v589 = vld [vmem:[%s575 + $0xc0] sm:$0xff]
                  %590 = vst [vmem:[%s576 + $0x30] sm:$0xff] %v589
                  %v591 = vld [vmem:[%s575 + $0xe0] sm:$0xff]
                  %592 = vst [vmem:[%s576 + $0x38] sm:$0xff] %v591
                  %v593 = vld [vmem:[%s575 + $0x100] sm:$0xff]
                  %594 = vst [vmem:[%s576 + $0x40] sm:$0xff] %v593
                  %v595 = vld [vmem:[%s575 + $0x120] sm:$0xff]
                  %596 = vst [vmem:[%s576 + $0x48] sm:$0xff] %v595
                  %v597 = vld [vmem:[%s575 + $0x140] sm:$0xff]
                  %598 = vst [vmem:[%s576 + $0x50] sm:$0xff] %v597
                  %v599 = vld [vmem:[%s575 + $0x160] sm:$0xff]
                  %600 = vst [vmem:[%s576 + $0x58] sm:$0xff] %v599
                  %v601 = vld [vmem:[%s575 + $0x180] sm:$0xff]
                  %602 = vst [vmem:[%s576 + $0x60] sm:$0xff] %v601
                  %v603 = vld [vmem:[%s575 + $0x1a0] sm:$0xff]
                  %604 = vst [vmem:[%s576 + $0x68] sm:$0xff] %v603
                  %v605 = vld [vmem:[%s575 + $0x1c0] sm:$0xff]
                  %606 = vst [vmem:[%s576 + $0x70] sm:$0xff] %v605
                  %v607 = vld [vmem:[%s575 + $0x1e0] sm:$0xff]
                  %608 = vst [vmem:[%s576 + $0x78] sm:$0xff] %v607
                  %v609 = vld [vmem:[%s575 + $0x200] sm:$0xff]
                  %610 = vst [vmem:[%s576 + $0x80] sm:$0xff] %v609
                  %v611 = vld [vmem:[%s575 + $0x220] sm:$0xff]
                  %612 = vst [vmem:[%s576 + $0x88] sm:$0xff] %v611
                  %v613 = vld [vmem:[%s575 + $0x240] sm:$0xff]
                  %614 = vst [vmem:[%s576 + $0x90] sm:$0xff] %v613
                  %v615 = vld [vmem:[%s575 + $0x260] sm:$0xff]
                  %616 = vst [vmem:[%s576 + $0x98] sm:$0xff] %v615
                  %v617 = vld [vmem:[%s575 + $0x280] sm:$0xff]
                  %618 = vst [vmem:[%s576 + $0xa0] sm:$0xff] %v617
                  %v619 = vld [vmem:[%s575 + $0x2a0] sm:$0xff]
                  %620 = vst [vmem:[%s576 + $0xa8] sm:$0xff] %v619
                  %v621 = vld [vmem:[%s575 + $0x2c0] sm:$0xff]
                  %622 = vst [vmem:[%s576 + $0xb0] sm:$0xff] %v621
                  %v623 = vld [vmem:[%s575 + $0x2e0] sm:$0xff]
                  %624 = vst [vmem:[%s576 + $0xb8] sm:$0xff] %v623
                  %v625 = vld [vmem:[%s575 + $0x300] sm:$0xff]
                  %626 = vst [vmem:[%s576 + $0xc0] sm:$0xff] %v625
                  %v627 = vld [vmem:[%s575 + $0x320] sm:$0xff]
                  %628 = vst [vmem:[%s576 + $0xc8] sm:$0xff] %v627
                  %v629 = vld [vmem:[%s575 + $0x340] sm:$0xff]
                  %630 = vst [vmem:[%s576 + $0xd0] sm:$0xff] %v629
                  %v631 = vld [vmem:[%s575 + $0x360] sm:$0xff]
                  %632 = vst [vmem:[%s576 + $0xd8] sm:$0xff] %v631
                  %v633 = vld [vmem:[%s575 + $0x380] sm:$0xff]
                  %634 = vst [vmem:[%s576 + $0xe0] sm:$0xff] %v633
                  %v635 = vld [vmem:[%s575 + $0x3a0] sm:$0xff]
                  %636 = vst [vmem:[%s576 + $0xe8] sm:$0xff] %v635
                  %v637 = vld [vmem:[%s575 + $0x3c0] sm:$0xff]
                  %638 = vst [vmem:[%s576 + $0xf0] sm:$0xff] %v637
                  %v639 = vld [vmem:[%s575 + $0x3e0] sm:$0xff]
                  %640 = vst [vmem:[%s576 + $0xf8] sm:$0xff] %v639
                  %v641 = vld [vmem:[%s575 + $0x400] sm:$0xff]
                  %642 = vst [vmem:[%s576 + $0x100] sm:$0xff] %v641
                  %v643 = vld [vmem:[%s575 + $0x420] sm:$0xff]
                  %644 = vst [vmem:[%s576 + $0x108] sm:$0xff] %v643
                  %v645 = vld [vmem:[%s575 + $0x440] sm:$0xff]
                  %646 = vst [vmem:[%s576 + $0x110] sm:$0xff] %v645
                  %v647 = vld [vmem:[%s575 + $0x460] sm:$0xff]
                  %648 = vst [vmem:[%s576 + $0x118] sm:$0xff] %v647
                  %v649 = vld [vmem:[%s575 + $0x480] sm:$0xff]
                  %650 = vst [vmem:[%s576 + $0x120] sm:$0xff] %v649
                  %v651 = vld [vmem:[%s575 + $0x4a0] sm:$0xff]
                  %652 = vst [vmem:[%s576 + $0x128] sm:$0xff] %v651
                  %v653 = vld [vmem:[%s575 + $0x4c0] sm:$0xff]
                  %654 = vst [vmem:[%s576 + $0x130] sm:$0xff] %v653
                  %v655 = vld [vmem:[%s575 + $0x4e0] sm:$0xff]
                  %656 = vst [vmem:[%s576 + $0x138] sm:$0xff] %v655
                  %v657 = vld [vmem:[%s575 + $0x500] sm:$0xff]
                  %658 = vst [vmem:[%s576 + $0x140] sm:$0xff] %v657
                  %v659 = vld [vmem:[%s575 + $0x520] sm:$0xff]
                  %660 = vst [vmem:[%s576 + $0x148] sm:$0xff] %v659
                  %v661 = vld [vmem:[%s575 + $0x540] sm:$0xff]
                  %662 = vst [vmem:[%s576 + $0x150] sm:$0xff] %v661
                  %v663 = vld [vmem:[%s575 + $0x560] sm:$0xff]
                  %664 = vst [vmem:[%s576 + $0x158] sm:$0xff] %v663
                  %v665 = vld [vmem:[%s575 + $0x580] sm:$0xff]
                  %666 = vst [vmem:[%s576 + $0x160] sm:$0xff] %v665
                  %v667 = vld [vmem:[%s575 + $0x5a0] sm:$0xff]
                  %668 = vst [vmem:[%s576 + $0x168] sm:$0xff] %v667
                  %v669 = vld [vmem:[%s575 + $0x5c0] sm:$0xff]
                  %670 = vst [vmem:[%s576 + $0x170] sm:$0xff] %v669
                  %v671 = vld [vmem:[%s575 + $0x5e0] sm:$0xff]
                  %672 = vst [vmem:[%s576 + $0x178] sm:$0xff] %v671
                  %v673 = vld [vmem:[%s575 + $0x600] sm:$0xff]
                  %674 = vst [vmem:[%s576 + $0x180] sm:$0xff] %v673
                  %v675 = vld [vmem:[%s575 + $0x620] sm:$0xff]
                  %676 = vst [vmem:[%s576 + $0x188] sm:$0xff] %v675
                  %v677 = vld [vmem:[%s575 + $0x640] sm:$0xff]
                  %678 = vst [vmem:[%s576 + $0x190] sm:$0xff] %v677
                  %v679 = vld [vmem:[%s575 + $0x660] sm:$0xff]
                  %680 = vst [vmem:[%s576 + $0x198] sm:$0xff] %v679
                  %v681 = vld [vmem:[%s575 + $0x680] sm:$0xff]
                  %682 = vst [vmem:[%s576 + $0x1a0] sm:$0xff] %v681
                  %v683 = vld [vmem:[%s575 + $0x6a0] sm:$0xff]
                  %684 = vst [vmem:[%s576 + $0x1a8] sm:$0xff] %v683
                  %v685 = vld [vmem:[%s575 + $0x6c0] sm:$0xff]
                  %686 = vst [vmem:[%s576 + $0x1b0] sm:$0xff] %v685
                  %v687 = vld [vmem:[%s575 + $0x6e0] sm:$0xff]
                  %688 = vst [vmem:[%s576 + $0x1b8] sm:$0xff] %v687
                  %v689 = vld [vmem:[%s575 + $0x700] sm:$0xff]
                  %690 = vst [vmem:[%s576 + $0x1c0] sm:$0xff] %v689
                  %v691 = vld [vmem:[%s575 + $0x720] sm:$0xff]
                  %692 = vst [vmem:[%s576 + $0x1c8] sm:$0xff] %v691
                  %v693 = vld [vmem:[%s575 + $0x740] sm:$0xff]
                  %694 = vst [vmem:[%s576 + $0x1d0] sm:$0xff] %v693
                  %v695 = vld [vmem:[%s575 + $0x760] sm:$0xff]
                  %696 = vst [vmem:[%s576 + $0x1d8] sm:$0xff] %v695
                  %v697 = vld [vmem:[%s575 + $0x780] sm:$0xff]
                  %698 = vst [vmem:[%s576 + $0x1e0] sm:$0xff] %v697
                  %v699 = vld [vmem:[%s575 + $0x7a0] sm:$0xff]
                  %700 = vst [vmem:[%s576 + $0x1e8] sm:$0xff] %v699
                  %v701 = vld [vmem:[%s575 + $0x7c0] sm:$0xff]
                  %702 = vst [vmem:[%s576 + $0x1f0] sm:$0xff] %v701
                  %v703 = vld [vmem:[%s575 + $0x7e0] sm:$0xff]
                  %704 = vst [vmem:[%s576 + $0x1f8] sm:$0xff] %v703
                  %v705 = vld [vmem:[%s575 + $0x800] sm:$0xff]
                  %706 = vst [vmem:[%s576 + $0x200] sm:$0xff] %v705
                  %v707 = vld [vmem:[%s575 + $0x820] sm:$0xff]
                  %708 = vst [vmem:[%s576 + $0x208] sm:$0xff] %v707
                  %v709 = vld [vmem:[%s575 + $0x840] sm:$0xff]
                  %710 = vst [vmem:[%s576 + $0x210] sm:$0xff] %v709
                  %v711 = vld [vmem:[%s575 + $0x860] sm:$0xff]
                  %712 = vst [vmem:[%s576 + $0x218] sm:$0xff] %v711
                  %v713 = vld [vmem:[%s575 + $0x880] sm:$0xff]
                  %714 = vst [vmem:[%s576 + $0x220] sm:$0xff] %v713
                  %v715 = vld [vmem:[%s575 + $0x8a0] sm:$0xff]
                  %716 = vst [vmem:[%s576 + $0x228] sm:$0xff] %v715
                  %v717 = vld [vmem:[%s575 + $0x8c0] sm:$0xff]
                  %718 = vst [vmem:[%s576 + $0x230] sm:$0xff] %v717
                  %v719 = vld [vmem:[%s575 + $0x8e0] sm:$0xff]
                  %720 = vst [vmem:[%s576 + $0x238] sm:$0xff] %v719
                  %v721 = vld [vmem:[%s575 + $0x900] sm:$0xff]
                  %722 = vst [vmem:[%s576 + $0x240] sm:$0xff] %v721
                  %v723 = vld [vmem:[%s575 + $0x920] sm:$0xff]
                  %724 = vst [vmem:[%s576 + $0x248] sm:$0xff] %v723
                  %v725 = vld [vmem:[%s575 + $0x940] sm:$0xff]
                  %726 = vst [vmem:[%s576 + $0x250] sm:$0xff] %v725
                  %v727 = vld [vmem:[%s575 + $0x960] sm:$0xff]
                  %728 = vst [vmem:[%s576 + $0x258] sm:$0xff] %v727
                  %v729 = vld [vmem:[%s575 + $0x980] sm:$0xff]
                  %730 = vst [vmem:[%s576 + $0x260] sm:$0xff] %v729
                  %v731 = vld [vmem:[%s575 + $0x9a0] sm:$0xff]
                  %732 = vst [vmem:[%s576 + $0x268] sm:$0xff] %v731
                  %v733 = vld [vmem:[%s575 + $0x9c0] sm:$0xff]
                  %734 = vst [vmem:[%s576 + $0x270] sm:$0xff] %v733
                  %v735 = vld [vmem:[%s575 + $0x9e0] sm:$0xff]
                  %736 = vst [vmem:[%s576 + $0x278] sm:$0xff] %v735
                  %v737 = vld [vmem:[%s575 + $0xa00] sm:$0xff]
                  %738 = vst [vmem:[%s576 + $0x280] sm:$0xff] %v737
                  %v739 = vld [vmem:[%s575 + $0xa20] sm:$0xff]
                  %740 = vst [vmem:[%s576 + $0x288] sm:$0xff] %v739
                  %v741 = vld [vmem:[%s575 + $0xa40] sm:$0xff]
                  %742 = vst [vmem:[%s576 + $0x290] sm:$0xff] %v741
                  %v743 = vld [vmem:[%s575 + $0xa60] sm:$0xff]
                  %744 = vst [vmem:[%s576 + $0x298] sm:$0xff] %v743
                  %v745 = vld [vmem:[%s575 + $0xa80] sm:$0xff]
                  %746 = vst [vmem:[%s576 + $0x2a0] sm:$0xff] %v745
                  %v747 = vld [vmem:[%s575 + $0xaa0] sm:$0xff]
                  %748 = vst [vmem:[%s576 + $0x2a8] sm:$0xff] %v747
                  %v749 = vld [vmem:[%s575 + $0xac0] sm:$0xff]
                  %750 = vst [vmem:[%s576 + $0x2b0] sm:$0xff] %v749
                  %v751 = vld [vmem:[%s575 + $0xae0] sm:$0xff]
                  %752 = vst [vmem:[%s576 + $0x2b8] sm:$0xff] %v751
                  %v753 = vld [vmem:[%s575 + $0xb00] sm:$0xff]
                  %754 = vst [vmem:[%s576 + $0x2c0] sm:$0xff] %v753
                  %v755 = vld [vmem:[%s575 + $0xb20] sm:$0xff]
                  %756 = vst [vmem:[%s576 + $0x2c8] sm:$0xff] %v755
                  %v757 = vld [vmem:[%s575 + $0xb40] sm:$0xff]
                  %758 = vst [vmem:[%s576 + $0x2d0] sm:$0xff] %v757
                  %v759 = vld [vmem:[%s575 + $0xb60] sm:$0xff]
                  %760 = vst [vmem:[%s576 + $0x2d8] sm:$0xff] %v759
                  %v761 = vld [vmem:[%s575 + $0xb80] sm:$0xff]
                  %762 = vst [vmem:[%s576 + $0x2e0] sm:$0xff] %v761
                  %v763 = vld [vmem:[%s575 + $0xba0] sm:$0xff]
                  %764 = vst [vmem:[%s576 + $0x2e8] sm:$0xff] %v763
                  %v765 = vld [vmem:[%s575 + $0xbc0] sm:$0xff]
                  %766 = vst [vmem:[%s576 + $0x2f0] sm:$0xff] %v765
                  %v767 = vld [vmem:[%s575 + $0xbe0] sm:$0xff]
                  %768 = vst [vmem:[%s576 + $0x2f8] sm:$0xff] %v767
                  %v769 = vld [vmem:[%s575 + $0xc00] sm:$0xff]
                  %770 = vst [vmem:[%s576 + $0x300] sm:$0xff] %v769
                  %v771 = vld [vmem:[%s575 + $0xc20] sm:$0xff]
                  %772 = vst [vmem:[%s576 + $0x308] sm:$0xff] %v771
                  %v773 = vld [vmem:[%s575 + $0xc40] sm:$0xff]
                  %774 = vst [vmem:[%s576 + $0x310] sm:$0xff] %v773
                  %v775 = vld [vmem:[%s575 + $0xc60] sm:$0xff]
                  %776 = vst [vmem:[%s576 + $0x318] sm:$0xff] %v775
                  %v777 = vld [vmem:[%s575 + $0xc80] sm:$0xff]
                  %778 = vst [vmem:[%s576 + $0x320] sm:$0xff] %v777
                  %v779 = vld [vmem:[%s575 + $0xca0] sm:$0xff]
                  %780 = vst [vmem:[%s576 + $0x328] sm:$0xff] %v779
                  %v781 = vld [vmem:[%s575 + $0xcc0] sm:$0xff]
                  %782 = vst [vmem:[%s576 + $0x330] sm:$0xff] %v781
                  %v783 = vld [vmem:[%s575 + $0xce0] sm:$0xff]
                  %784 = vst [vmem:[%s576 + $0x338] sm:$0xff] %v783
                  %v785 = vld [vmem:[%s575 + $0xd00] sm:$0xff]
                  %786 = vst [vmem:[%s576 + $0x340] sm:$0xff] %v785
                  %v787 = vld [vmem:[%s575 + $0xd20] sm:$0xff]
                  %788 = vst [vmem:[%s576 + $0x348] sm:$0xff] %v787
                  %v789 = vld [vmem:[%s575 + $0xd40] sm:$0xff]
                  %790 = vst [vmem:[%s576 + $0x350] sm:$0xff] %v789
                  %v791 = vld [vmem:[%s575 + $0xd60] sm:$0xff]
                  %792 = vst [vmem:[%s576 + $0x358] sm:$0xff] %v791
                  %v793 = vld [vmem:[%s575 + $0xd80] sm:$0xff]
                  %794 = vst [vmem:[%s576 + $0x360] sm:$0xff] %v793
                  %v795 = vld [vmem:[%s575 + $0xda0] sm:$0xff]
                  %796 = vst [vmem:[%s576 + $0x368] sm:$0xff] %v795
                  %v797 = vld [vmem:[%s575 + $0xdc0] sm:$0xff]
                  %798 = vst [vmem:[%s576 + $0x370] sm:$0xff] %v797
                  %v799 = vld [vmem:[%s575 + $0xde0] sm:$0xff]
                  %800 = vst [vmem:[%s576 + $0x378] sm:$0xff] %v799
                  %v801 = vld [vmem:[%s575 + $0xe00] sm:$0xff]
                  %802 = vst [vmem:[%s576 + $0x380] sm:$0xff] %v801
                  %v803 = vld [vmem:[%s575 + $0xe20] sm:$0xff]
                  %804 = vst [vmem:[%s576 + $0x388] sm:$0xff] %v803
                  %v805 = vld [vmem:[%s575 + $0xe40] sm:$0xff]
                  %806 = vst [vmem:[%s576 + $0x390] sm:$0xff] %v805
                  %v807 = vld [vmem:[%s575 + $0xe60] sm:$0xff]
                  %808 = vst [vmem:[%s576 + $0x398] sm:$0xff] %v807
                  %v809 = vld [vmem:[%s575 + $0xe80] sm:$0xff]
                  %810 = vst [vmem:[%s576 + $0x3a0] sm:$0xff] %v809
                  %v811 = vld [vmem:[%s575 + $0xea0] sm:$0xff]
                  %812 = vst [vmem:[%s576 + $0x3a8] sm:$0xff] %v811
                  %v813 = vld [vmem:[%s575 + $0xec0] sm:$0xff]
                  %814 = vst [vmem:[%s576 + $0x3b0] sm:$0xff] %v813
                  %v815 = vld [vmem:[%s575 + $0xee0] sm:$0xff]
                  %816 = vst [vmem:[%s576 + $0x3b8] sm:$0xff] %v815
                  %v817 = vld [vmem:[%s575 + $0xf00] sm:$0xff]
                  %818 = vst [vmem:[%s576 + $0x3c0] sm:$0xff] %v817
                  %v819 = vld [vmem:[%s575 + $0xf20] sm:$0xff]
                  %820 = vst [vmem:[%s576 + $0x3c8] sm:$0xff] %v819
                  %v821 = vld [vmem:[%s575 + $0xf40] sm:$0xff]
                  %822 = vst [vmem:[%s576 + $0x3d0] sm:$0xff] %v821
                  %v823 = vld [vmem:[%s575 + $0xf60] sm:$0xff]
                  %824 = vst [vmem:[%s576 + $0x3d8] sm:$0xff] %v823
                  %v825 = vld [vmem:[%s575 + $0xf80] sm:$0xff]
                  %826 = vst [vmem:[%s576 + $0x3e0] sm:$0xff] %v825
                  %v827 = vld [vmem:[%s575 + $0xfa0] sm:$0xff]
                  %828 = vst [vmem:[%s576 + $0x3e8] sm:$0xff] %v827
                  %v829 = vld [vmem:[%s575 + $0xfc0] sm:$0xff]
                  %830 = vst [vmem:[%s576 + $0x3f0] sm:$0xff] %v829
                  %v831 = vld [vmem:[%s575 + $0xfe0] sm:$0xff]
                  %832 = vst [vmem:[%s576 + $0x3f8] sm:$0xff] %v831
                  %v833 = vld [vmem:[%s575 + $0x1000] sm:$0xff]
                  %834 = vst [vmem:[%s576 + $0x400] sm:$0xff] %v833
                  %v835 = vld [vmem:[%s575 + $0x1020] sm:$0xff]
                  %836 = vst [vmem:[%s576 + $0x408] sm:$0xff] %v835
                  %v837 = vld [vmem:[%s575 + $0x1040] sm:$0xff]
                  %838 = vst [vmem:[%s576 + $0x410] sm:$0xff] %v837
                  %v839 = vld [vmem:[%s575 + $0x1060] sm:$0xff]
                  %840 = vst [vmem:[%s576 + $0x418] sm:$0xff] %v839
                  %v841 = vld [vmem:[%s575 + $0x1080] sm:$0xff]
                  %842 = vst [vmem:[%s576 + $0x420] sm:$0xff] %v841
                  %v843 = vld [vmem:[%s575 + $0x10a0] sm:$0xff]
                  %844 = vst [vmem:[%s576 + $0x428] sm:$0xff] %v843
                  %v845 = vld [vmem:[%s575 + $0x10c0] sm:$0xff]
                  %846 = vst [vmem:[%s576 + $0x430] sm:$0xff] %v845
                  %v847 = vld [vmem:[%s575 + $0x10e0] sm:$0xff]
                  %848 = vst [vmem:[%s576 + $0x438] sm:$0xff] %v847
                  %v849 = vld [vmem:[%s575 + $0x1100] sm:$0xff]
                  %850 = vst [vmem:[%s576 + $0x440] sm:$0xff] %v849
                  %v851 = vld [vmem:[%s575 + $0x1120] sm:$0xff]
                  %852 = vst [vmem:[%s576 + $0x448] sm:$0xff] %v851
                  %v853 = vld [vmem:[%s575 + $0x1140] sm:$0xff]
                  %854 = vst [vmem:[%s576 + $0x450] sm:$0xff] %v853
                  %v855 = vld [vmem:[%s575 + $0x1160] sm:$0xff]
                  %856 = vst [vmem:[%s576 + $0x458] sm:$0xff] %v855
                  %v857 = vld [vmem:[%s575 + $0x1180] sm:$0xff]
                  %858 = vst [vmem:[%s576 + $0x460] sm:$0xff] %v857
                  %v859 = vld [vmem:[%s575 + $0x11a0] sm:$0xff]
                  %860 = vst [vmem:[%s576 + $0x468] sm:$0xff] %v859
                  %v861 = vld [vmem:[%s575 + $0x11c0] sm:$0xff]
                  %862 = vst [vmem:[%s576 + $0x470] sm:$0xff] %v861
                  %v863 = vld [vmem:[%s575 + $0x11e0] sm:$0xff]
                  %864 = vst [vmem:[%s576 + $0x478] sm:$0xff] %v863
                $region68: #{model_tanh_forward.1} parent=62 // loop_footer
                  %s574 = sadd.s32 1, %s570
                $region69: #{model_tanh_forward.1} parent=62 // loop_footer_branch
                  %569 = sbr.rel target = $region65
                $region70: #{model_tanh_forward.1} parent=62 // loop_exit
                  _
              $region63: #{model_tanh_forward.1} parent=47 // pred_fallthru
                _
              // Predicated region
              $region71: #{model_tanh_forward.1} parent=47 // pred_check
                _
              $region72: #{model_tanh_forward.1} parent=47 // pred_check_branch
                %866 = sbr.rel target = $region74
              $region73: #{model_tanh_forward.1} parent=47 // pred_region
                _
              $region74: #{model_tanh_forward.1} parent=47 // pred_fallthru
                _
            $region48: #{model_tanh_forward.1} parent=43 // pred_fallthru
              _
            // Predicated region
            $region49: #{model_tanh_forward.1} parent=43 // pred_check
              _
            $region50: #{model_tanh_forward.1} parent=43 // pred_check_branch
              %268 = sbr.rel target = $region52
            $region51: #{model_tanh_forward.1} parent=43 // pred_region
              %s270 = ssub.s32 256, 1
              loop: start=0, step=1, limit=1
              $region53: #{model_tanh_forward.1} parent=51 // loop_pre_header
                _
              $region54: #{model_tanh_forward.1} parent=51 // loop_header
                %s272 = sphi 0, %s276
                %p273 = scmp.ge.s32.totalorder %s272, 1
                %s277 = sphi %s262, %s262
                %s278 = sphi %s260, %s260
              $region55: #{model_tanh_forward.1} parent=51 // loop_header_branch
                %275 = sbr.rel (%p273) target = $region59
              $region56: #{model_tanh_forward.1} parent=51 // loop_body
                %v279 = vld [vmem:[%s277] sm:%s270]
                %280 = vst [vmem:[%s278] sm:%s270] %v279
                %v281 = vld [vmem:[%s277 + $0x20] sm:%s270]
                %282 = vst [vmem:[%s278 + $0x8] sm:%s270] %v281
                %v283 = vld [vmem:[%s277 + $0x40] sm:%s270]
                %284 = vst [vmem:[%s278 + $0x10] sm:%s270] %v283
                %v285 = vld [vmem:[%s277 + $0x60] sm:%s270]
                %286 = vst [vmem:[%s278 + $0x18] sm:%s270] %v285
                %v287 = vld [vmem:[%s277 + $0x80] sm:%s270]
                %288 = vst [vmem:[%s278 + $0x20] sm:%s270] %v287
                %v289 = vld [vmem:[%s277 + $0xa0] sm:%s270]
                %290 = vst [vmem:[%s278 + $0x28] sm:%s270] %v289
                %v291 = vld [vmem:[%s277 + $0xc0] sm:%s270]
                %292 = vst [vmem:[%s278 + $0x30] sm:%s270] %v291
                %v293 = vld [vmem:[%s277 + $0xe0] sm:%s270]
                %294 = vst [vmem:[%s278 + $0x38] sm:%s270] %v293
                %v295 = vld [vmem:[%s277 + $0x100] sm:%s270]
                %296 = vst [vmem:[%s278 + $0x40] sm:%s270] %v295
                %v297 = vld [vmem:[%s277 + $0x120] sm:%s270]
                %298 = vst [vmem:[%s278 + $0x48] sm:%s270] %v297
                %v299 = vld [vmem:[%s277 + $0x140] sm:%s270]
                %300 = vst [vmem:[%s278 + $0x50] sm:%s270] %v299
                %v301 = vld [vmem:[%s277 + $0x160] sm:%s270]
                %302 = vst [vmem:[%s278 + $0x58] sm:%s270] %v301
                %v303 = vld [vmem:[%s277 + $0x180] sm:%s270]
                %304 = vst [vmem:[%s278 + $0x60] sm:%s270] %v303
                %v305 = vld [vmem:[%s277 + $0x1a0] sm:%s270]
                %306 = vst [vmem:[%s278 + $0x68] sm:%s270] %v305
                %v307 = vld [vmem:[%s277 + $0x1c0] sm:%s270]
                %308 = vst [vmem:[%s278 + $0x70] sm:%s270] %v307
                %v309 = vld [vmem:[%s277 + $0x1e0] sm:%s270]
                %310 = vst [vmem:[%s278 + $0x78] sm:%s270] %v309
                %v311 = vld [vmem:[%s277 + $0x200] sm:%s270]
                %312 = vst [vmem:[%s278 + $0x80] sm:%s270] %v311
                %v313 = vld [vmem:[%s277 + $0x220] sm:%s270]
                %314 = vst [vmem:[%s278 + $0x88] sm:%s270] %v313
                %v315 = vld [vmem:[%s277 + $0x240] sm:%s270]
                %316 = vst [vmem:[%s278 + $0x90] sm:%s270] %v315
                %v317 = vld [vmem:[%s277 + $0x260] sm:%s270]
                %318 = vst [vmem:[%s278 + $0x98] sm:%s270] %v317
                %v319 = vld [vmem:[%s277 + $0x280] sm:%s270]
                %320 = vst [vmem:[%s278 + $0xa0] sm:%s270] %v319
                %v321 = vld [vmem:[%s277 + $0x2a0] sm:%s270]
                %322 = vst [vmem:[%s278 + $0xa8] sm:%s270] %v321
                %v323 = vld [vmem:[%s277 + $0x2c0] sm:%s270]
                %324 = vst [vmem:[%s278 + $0xb0] sm:%s270] %v323
                %v325 = vld [vmem:[%s277 + $0x2e0] sm:%s270]
                %326 = vst [vmem:[%s278 + $0xb8] sm:%s270] %v325
                %v327 = vld [vmem:[%s277 + $0x300] sm:%s270]
                %328 = vst [vmem:[%s278 + $0xc0] sm:%s270] %v327
                %v329 = vld [vmem:[%s277 + $0x320] sm:%s270]
                %330 = vst [vmem:[%s278 + $0xc8] sm:%s270] %v329
                %v331 = vld [vmem:[%s277 + $0x340] sm:%s270]
                %332 = vst [vmem:[%s278 + $0xd0] sm:%s270] %v331
                %v333 = vld [vmem:[%s277 + $0x360] sm:%s270]
                %334 = vst [vmem:[%s278 + $0xd8] sm:%s270] %v333
                %v335 = vld [vmem:[%s277 + $0x380] sm:%s270]
                %336 = vst [vmem:[%s278 + $0xe0] sm:%s270] %v335
                %v337 = vld [vmem:[%s277 + $0x3a0] sm:%s270]
                %338 = vst [vmem:[%s278 + $0xe8] sm:%s270] %v337
                %v339 = vld [vmem:[%s277 + $0x3c0] sm:%s270]
                %340 = vst [vmem:[%s278 + $0xf0] sm:%s270] %v339
                %v341 = vld [vmem:[%s277 + $0x3e0] sm:%s270]
                %342 = vst [vmem:[%s278 + $0xf8] sm:%s270] %v341
                %v343 = vld [vmem:[%s277 + $0x400] sm:%s270]
                %344 = vst [vmem:[%s278 + $0x100] sm:%s270] %v343
                %v345 = vld [vmem:[%s277 + $0x420] sm:%s270]
                %346 = vst [vmem:[%s278 + $0x108] sm:%s270] %v345
                %v347 = vld [vmem:[%s277 + $0x440] sm:%s270]
                %348 = vst [vmem:[%s278 + $0x110] sm:%s270] %v347
                %v349 = vld [vmem:[%s277 + $0x460] sm:%s270]
                %350 = vst [vmem:[%s278 + $0x118] sm:%s270] %v349
                %v351 = vld [vmem:[%s277 + $0x480] sm:%s270]
                %352 = vst [vmem:[%s278 + $0x120] sm:%s270] %v351
                %v353 = vld [vmem:[%s277 + $0x4a0] sm:%s270]
                %354 = vst [vmem:[%s278 + $0x128] sm:%s270] %v353
                %v355 = vld [vmem:[%s277 + $0x4c0] sm:%s270]
                %356 = vst [vmem:[%s278 + $0x130] sm:%s270] %v355
                %v357 = vld [vmem:[%s277 + $0x4e0] sm:%s270]
                %358 = vst [vmem:[%s278 + $0x138] sm:%s270] %v357
                %v359 = vld [vmem:[%s277 + $0x500] sm:%s270]
                %360 = vst [vmem:[%s278 + $0x140] sm:%s270] %v359
                %v361 = vld [vmem:[%s277 + $0x520] sm:%s270]
                %362 = vst [vmem:[%s278 + $0x148] sm:%s270] %v361
                %v363 = vld [vmem:[%s277 + $0x540] sm:%s270]
                %364 = vst [vmem:[%s278 + $0x150] sm:%s270] %v363
                %v365 = vld [vmem:[%s277 + $0x560] sm:%s270]
                %366 = vst [vmem:[%s278 + $0x158] sm:%s270] %v365
                %v367 = vld [vmem:[%s277 + $0x580] sm:%s270]
                %368 = vst [vmem:[%s278 + $0x160] sm:%s270] %v367
                %v369 = vld [vmem:[%s277 + $0x5a0] sm:%s270]
                %370 = vst [vmem:[%s278 + $0x168] sm:%s270] %v369
                %v371 = vld [vmem:[%s277 + $0x5c0] sm:%s270]
                %372 = vst [vmem:[%s278 + $0x170] sm:%s270] %v371
                %v373 = vld [vmem:[%s277 + $0x5e0] sm:%s270]
                %374 = vst [vmem:[%s278 + $0x178] sm:%s270] %v373
                %v375 = vld [vmem:[%s277 + $0x600] sm:%s270]
                %376 = vst [vmem:[%s278 + $0x180] sm:%s270] %v375
                %v377 = vld [vmem:[%s277 + $0x620] sm:%s270]
                %378 = vst [vmem:[%s278 + $0x188] sm:%s270] %v377
                %v379 = vld [vmem:[%s277 + $0x640] sm:%s270]
                %380 = vst [vmem:[%s278 + $0x190] sm:%s270] %v379
                %v381 = vld [vmem:[%s277 + $0x660] sm:%s270]
                %382 = vst [vmem:[%s278 + $0x198] sm:%s270] %v381
                %v383 = vld [vmem:[%s277 + $0x680] sm:%s270]
                %384 = vst [vmem:[%s278 + $0x1a0] sm:%s270] %v383
                %v385 = vld [vmem:[%s277 + $0x6a0] sm:%s270]
                %386 = vst [vmem:[%s278 + $0x1a8] sm:%s270] %v385
                %v387 = vld [vmem:[%s277 + $0x6c0] sm:%s270]
                %388 = vst [vmem:[%s278 + $0x1b0] sm:%s270] %v387
                %v389 = vld [vmem:[%s277 + $0x6e0] sm:%s270]
                %390 = vst [vmem:[%s278 + $0x1b8] sm:%s270] %v389
                %v391 = vld [vmem:[%s277 + $0x700] sm:%s270]
                %392 = vst [vmem:[%s278 + $0x1c0] sm:%s270] %v391
                %v393 = vld [vmem:[%s277 + $0x720] sm:%s270]
                %394 = vst [vmem:[%s278 + $0x1c8] sm:%s270] %v393
                %v395 = vld [vmem:[%s277 + $0x740] sm:%s270]
                %396 = vst [vmem:[%s278 + $0x1d0] sm:%s270] %v395
                %v397 = vld [vmem:[%s277 + $0x760] sm:%s270]
                %398 = vst [vmem:[%s278 + $0x1d8] sm:%s270] %v397
                %v399 = vld [vmem:[%s277 + $0x780] sm:%s270]
                %400 = vst [vmem:[%s278 + $0x1e0] sm:%s270] %v399
                %v401 = vld [vmem:[%s277 + $0x7a0] sm:%s270]
                %402 = vst [vmem:[%s278 + $0x1e8] sm:%s270] %v401
                %v403 = vld [vmem:[%s277 + $0x7c0] sm:%s270]
                %404 = vst [vmem:[%s278 + $0x1f0] sm:%s270] %v403
                %v405 = vld [vmem:[%s277 + $0x7e0] sm:%s270]
                %406 = vst [vmem:[%s278 + $0x1f8] sm:%s270] %v405
                %v407 = vld [vmem:[%s277 + $0x800] sm:%s270]
                %408 = vst [vmem:[%s278 + $0x200] sm:%s270] %v407
                %v409 = vld [vmem:[%s277 + $0x820] sm:%s270]
                %410 = vst [vmem:[%s278 + $0x208] sm:%s270] %v409
                %v411 = vld [vmem:[%s277 + $0x840] sm:%s270]
                %412 = vst [vmem:[%s278 + $0x210] sm:%s270] %v411
                %v413 = vld [vmem:[%s277 + $0x860] sm:%s270]
                %414 = vst [vmem:[%s278 + $0x218] sm:%s270] %v413
                %v415 = vld [vmem:[%s277 + $0x880] sm:%s270]
                %416 = vst [vmem:[%s278 + $0x220] sm:%s270] %v415
                %v417 = vld [vmem:[%s277 + $0x8a0] sm:%s270]
                %418 = vst [vmem:[%s278 + $0x228] sm:%s270] %v417
                %v419 = vld [vmem:[%s277 + $0x8c0] sm:%s270]
                %420 = vst [vmem:[%s278 + $0x230] sm:%s270] %v419
                %v421 = vld [vmem:[%s277 + $0x8e0] sm:%s270]
                %422 = vst [vmem:[%s278 + $0x238] sm:%s270] %v421
                %v423 = vld [vmem:[%s277 + $0x900] sm:%s270]
                %424 = vst [vmem:[%s278 + $0x240] sm:%s270] %v423
                %v425 = vld [vmem:[%s277 + $0x920] sm:%s270]
                %426 = vst [vmem:[%s278 + $0x248] sm:%s270] %v425
                %v427 = vld [vmem:[%s277 + $0x940] sm:%s270]
                %428 = vst [vmem:[%s278 + $0x250] sm:%s270] %v427
                %v429 = vld [vmem:[%s277 + $0x960] sm:%s270]
                %430 = vst [vmem:[%s278 + $0x258] sm:%s270] %v429
                %v431 = vld [vmem:[%s277 + $0x980] sm:%s270]
                %432 = vst [vmem:[%s278 + $0x260] sm:%s270] %v431
                %v433 = vld [vmem:[%s277 + $0x9a0] sm:%s270]
                %434 = vst [vmem:[%s278 + $0x268] sm:%s270] %v433
                %v435 = vld [vmem:[%s277 + $0x9c0] sm:%s270]
                %436 = vst [vmem:[%s278 + $0x270] sm:%s270] %v435
                %v437 = vld [vmem:[%s277 + $0x9e0] sm:%s270]
                %438 = vst [vmem:[%s278 + $0x278] sm:%s270] %v437
                %v439 = vld [vmem:[%s277 + $0xa00] sm:%s270]
                %440 = vst [vmem:[%s278 + $0x280] sm:%s270] %v439
                %v441 = vld [vmem:[%s277 + $0xa20] sm:%s270]
                %442 = vst [vmem:[%s278 + $0x288] sm:%s270] %v441
                %v443 = vld [vmem:[%s277 + $0xa40] sm:%s270]
                %444 = vst [vmem:[%s278 + $0x290] sm:%s270] %v443
                %v445 = vld [vmem:[%s277 + $0xa60] sm:%s270]
                %446 = vst [vmem:[%s278 + $0x298] sm:%s270] %v445
                %v447 = vld [vmem:[%s277 + $0xa80] sm:%s270]
                %448 = vst [vmem:[%s278 + $0x2a0] sm:%s270] %v447
                %v449 = vld [vmem:[%s277 + $0xaa0] sm:%s270]
                %450 = vst [vmem:[%s278 + $0x2a8] sm:%s270] %v449
                %v451 = vld [vmem:[%s277 + $0xac0] sm:%s270]
                %452 = vst [vmem:[%s278 + $0x2b0] sm:%s270] %v451
                %v453 = vld [vmem:[%s277 + $0xae0] sm:%s270]
                %454 = vst [vmem:[%s278 + $0x2b8] sm:%s270] %v453
                %v455 = vld [vmem:[%s277 + $0xb00] sm:%s270]
                %456 = vst [vmem:[%s278 + $0x2c0] sm:%s270] %v455
                %v457 = vld [vmem:[%s277 + $0xb20] sm:%s270]
                %458 = vst [vmem:[%s278 + $0x2c8] sm:%s270] %v457
                %v459 = vld [vmem:[%s277 + $0xb40] sm:%s270]
                %460 = vst [vmem:[%s278 + $0x2d0] sm:%s270] %v459
                %v461 = vld [vmem:[%s277 + $0xb60] sm:%s270]
                %462 = vst [vmem:[%s278 + $0x2d8] sm:%s270] %v461
                %v463 = vld [vmem:[%s277 + $0xb80] sm:%s270]
                %464 = vst [vmem:[%s278 + $0x2e0] sm:%s270] %v463
                %v465 = vld [vmem:[%s277 + $0xba0] sm:%s270]
                %466 = vst [vmem:[%s278 + $0x2e8] sm:%s270] %v465
                %v467 = vld [vmem:[%s277 + $0xbc0] sm:%s270]
                %468 = vst [vmem:[%s278 + $0x2f0] sm:%s270] %v467
                %v469 = vld [vmem:[%s277 + $0xbe0] sm:%s270]
                %470 = vst [vmem:[%s278 + $0x2f8] sm:%s270] %v469
                %v471 = vld [vmem:[%s277 + $0xc00] sm:%s270]
                %472 = vst [vmem:[%s278 + $0x300] sm:%s270] %v471
                %v473 = vld [vmem:[%s277 + $0xc20] sm:%s270]
                %474 = vst [vmem:[%s278 + $0x308] sm:%s270] %v473
                %v475 = vld [vmem:[%s277 + $0xc40] sm:%s270]
                %476 = vst [vmem:[%s278 + $0x310] sm:%s270] %v475
                %v477 = vld [vmem:[%s277 + $0xc60] sm:%s270]
                %478 = vst [vmem:[%s278 + $0x318] sm:%s270] %v477
                %v479 = vld [vmem:[%s277 + $0xc80] sm:%s270]
                %480 = vst [vmem:[%s278 + $0x320] sm:%s270] %v479
                %v481 = vld [vmem:[%s277 + $0xca0] sm:%s270]
                %482 = vst [vmem:[%s278 + $0x328] sm:%s270] %v481
                %v483 = vld [vmem:[%s277 + $0xcc0] sm:%s270]
                %484 = vst [vmem:[%s278 + $0x330] sm:%s270] %v483
                %v485 = vld [vmem:[%s277 + $0xce0] sm:%s270]
                %486 = vst [vmem:[%s278 + $0x338] sm:%s270] %v485
                %v487 = vld [vmem:[%s277 + $0xd00] sm:%s270]
                %488 = vst [vmem:[%s278 + $0x340] sm:%s270] %v487
                %v489 = vld [vmem:[%s277 + $0xd20] sm:%s270]
                %490 = vst [vmem:[%s278 + $0x348] sm:%s270] %v489
                %v491 = vld [vmem:[%s277 + $0xd40] sm:%s270]
                %492 = vst [vmem:[%s278 + $0x350] sm:%s270] %v491
                %v493 = vld [vmem:[%s277 + $0xd60] sm:%s270]
                %494 = vst [vmem:[%s278 + $0x358] sm:%s270] %v493
                %v495 = vld [vmem:[%s277 + $0xd80] sm:%s270]
                %496 = vst [vmem:[%s278 + $0x360] sm:%s270] %v495
                %v497 = vld [vmem:[%s277 + $0xda0] sm:%s270]
                %498 = vst [vmem:[%s278 + $0x368] sm:%s270] %v497
                %v499 = vld [vmem:[%s277 + $0xdc0] sm:%s270]
                %500 = vst [vmem:[%s278 + $0x370] sm:%s270] %v499
                %v501 = vld [vmem:[%s277 + $0xde0] sm:%s270]
                %502 = vst [vmem:[%s278 + $0x378] sm:%s270] %v501
                %v503 = vld [vmem:[%s277 + $0xe00] sm:%s270]
                %504 = vst [vmem:[%s278 + $0x380] sm:%s270] %v503
                %v505 = vld [vmem:[%s277 + $0xe20] sm:%s270]
                %506 = vst [vmem:[%s278 + $0x388] sm:%s270] %v505
                %v507 = vld [vmem:[%s277 + $0xe40] sm:%s270]
                %508 = vst [vmem:[%s278 + $0x390] sm:%s270] %v507
                %v509 = vld [vmem:[%s277 + $0xe60] sm:%s270]
                %510 = vst [vmem:[%s278 + $0x398] sm:%s270] %v509
                %v511 = vld [vmem:[%s277 + $0xe80] sm:%s270]
                %512 = vst [vmem:[%s278 + $0x3a0] sm:%s270] %v511
                %v513 = vld [vmem:[%s277 + $0xea0] sm:%s270]
                %514 = vst [vmem:[%s278 + $0x3a8] sm:%s270] %v513
                %v515 = vld [vmem:[%s277 + $0xec0] sm:%s270]
                %516 = vst [vmem:[%s278 + $0x3b0] sm:%s270] %v515
                %v517 = vld [vmem:[%s277 + $0xee0] sm:%s270]
                %518 = vst [vmem:[%s278 + $0x3b8] sm:%s270] %v517
                %v519 = vld [vmem:[%s277 + $0xf00] sm:%s270]
                %520 = vst [vmem:[%s278 + $0x3c0] sm:%s270] %v519
                %v521 = vld [vmem:[%s277 + $0xf20] sm:%s270]
                %522 = vst [vmem:[%s278 + $0x3c8] sm:%s270] %v521
                %v523 = vld [vmem:[%s277 + $0xf40] sm:%s270]
                %524 = vst [vmem:[%s278 + $0x3d0] sm:%s270] %v523
                %v525 = vld [vmem:[%s277 + $0xf60] sm:%s270]
                %526 = vst [vmem:[%s278 + $0x3d8] sm:%s270] %v525
                %v527 = vld [vmem:[%s277 + $0xf80] sm:%s270]
                %528 = vst [vmem:[%s278 + $0x3e0] sm:%s270] %v527
                %v529 = vld [vmem:[%s277 + $0xfa0] sm:%s270]
                %530 = vst [vmem:[%s278 + $0x3e8] sm:%s270] %v529
                %v531 = vld [vmem:[%s277 + $0xfc0] sm:%s270]
                %532 = vst [vmem:[%s278 + $0x3f0] sm:%s270] %v531
                %v533 = vld [vmem:[%s277 + $0xfe0] sm:%s270]
                %534 = vst [vmem:[%s278 + $0x3f8] sm:%s270] %v533
                %v535 = vld [vmem:[%s277 + $0x1000] sm:%s270]
                %536 = vst [vmem:[%s278 + $0x400] sm:%s270] %v535
                %v537 = vld [vmem:[%s277 + $0x1020] sm:%s270]
                %538 = vst [vmem:[%s278 + $0x408] sm:%s270] %v537
                %v539 = vld [vmem:[%s277 + $0x1040] sm:%s270]
                %540 = vst [vmem:[%s278 + $0x410] sm:%s270] %v539
                %v541 = vld [vmem:[%s277 + $0x1060] sm:%s270]
                %542 = vst [vmem:[%s278 + $0x418] sm:%s270] %v541
                %v543 = vld [vmem:[%s277 + $0x1080] sm:%s270]
                %544 = vst [vmem:[%s278 + $0x420] sm:%s270] %v543
                %v545 = vld [vmem:[%s277 + $0x10a0] sm:%s270]
                %546 = vst [vmem:[%s278 + $0x428] sm:%s270] %v545
                %v547 = vld [vmem:[%s277 + $0x10c0] sm:%s270]
                %548 = vst [vmem:[%s278 + $0x430] sm:%s270] %v547
                %v549 = vld [vmem:[%s277 + $0x10e0] sm:%s270]
                %550 = vst [vmem:[%s278 + $0x438] sm:%s270] %v549
                %v551 = vld [vmem:[%s277 + $0x1100] sm:%s270]
                %552 = vst [vmem:[%s278 + $0x440] sm:%s270] %v551
                %v553 = vld [vmem:[%s277 + $0x1120] sm:%s270]
                %554 = vst [vmem:[%s278 + $0x448] sm:%s270] %v553
                %v555 = vld [vmem:[%s277 + $0x1140] sm:%s270]
                %556 = vst [vmem:[%s278 + $0x450] sm:%s270] %v555
                %v557 = vld [vmem:[%s277 + $0x1160] sm:%s270]
                %558 = vst [vmem:[%s278 + $0x458] sm:%s270] %v557
                %v559 = vld [vmem:[%s277 + $0x1180] sm:%s270]
                %560 = vst [vmem:[%s278 + $0x460] sm:%s270] %v559
                %v561 = vld [vmem:[%s277 + $0x11a0] sm:%s270]
                %562 = vst [vmem:[%s278 + $0x468] sm:%s270] %v561
                %v563 = vld [vmem:[%s277 + $0x11c0] sm:%s270]
                %564 = vst [vmem:[%s278 + $0x470] sm:%s270] %v563
                %v565 = vld [vmem:[%s277 + $0x11e0] sm:%s270]
                %566 = vst [vmem:[%s278 + $0x478] sm:%s270] %v565
              $region57: #{model_tanh_forward.1} parent=51 // loop_footer
                %s276 = sadd.s32 1, %s272
              $region58: #{model_tanh_forward.1} parent=51 // loop_footer_branch
                %271 = sbr.rel target = $region54
              $region59: #{model_tanh_forward.1} parent=51 // loop_exit
                _
            $region52: #{model_tanh_forward.1} parent=43 // pred_fallthru
              _
          $region44: #{model_tanh_forward.1} parent=39 // pred_fallthru
            _
          %867 = vnop
        $region40: #{model_tanh_forward.1} parent=31 // pred_fallthru
          _
        // Predicated region
        $region75: #{model_tanh_forward.1} parent=31 // pred_check
          %p868 = pneg %p181
        $region76: #{model_tanh_forward.1} parent=31 // pred_check_branch
          %870 = sbr.rel (%p868) target = $region78
        $region77: #{model_tanh_forward.1} parent=31 // pred_region
          %p871 = scmp.lt.s32.totalorder %s20, 3
          %s872 = scalar_select %p871, %s20, 3
          %s873 = scalar_lea.vmem %s6, %s872
        $region78: #{model_tanh_forward.1} parent=31 // pred_fallthru
          _
      $region32: #{model_tanh_forward.1} parent=5 // pred_fallthru
        _
      %p874 = scmp.le.s32.totalorder 1, %s13
      %p875 = scmp.lt.s32.totalorder %s13, 9
      %p876 = pnand %p874, %p875
      %p877 = pneg %p876
      // Predicated region
      $region79: #{model_tanh_forward.1} parent=5 // pred_check
        _
      $region80: #{model_tanh_forward.1} parent=5 // pred_check_branch
        %879 = sbr.rel (%p876) target = $region82
      $region81: #{model_tanh_forward.1} parent=5 // pred_region
        %s880 = ssub.s32 %s13, 1
        %s881 = sand.u32 %s148, 1
        %s882 = sand.u32 %s148, 1
        %s883 = smul.addr %s882, 1152
        %s884 = scalar_lea.vmem [#allocation2], %s883
        // Predicated region
        $region83: #{model_tanh_forward.1} parent=81 // pred_check
          %p885 = pneg %p161
        $region84: #{model_tanh_forward.1} parent=81 // pred_check_branch
          %887 = sbr.rel (%p885) target = $region86
        $region85: #{model_tanh_forward.1} parent=81 // pred_region
          _
        $region86: #{model_tanh_forward.1} parent=81 // pred_fallthru
          _
        %p888 = scmp.lt.s32.totalorder %s23, 1
        %s889 = scalar_select %p888, %s23, 1
        %s890 = smul.addr %s889, 41
        %s891 = smul.addr %s890, 8
        %s892 = scalar_lea.vmem %s0, %s891
        %p893 = pneg %p51
        %p894 = pneg %p48
        %p895 = pneg %p72
        %p896 = pneg %p69
        %p897 = pneg %p93
        %p898 = pneg %p90
        %p899 = pneg %p114
        %p900 = pneg %p111
        %p901 = pneg %p135
        %p902 = pneg %p132
        %s903 = sand.u32 %s148, 1
        %s904 = sand.u32 %s148, 1
        %s905 = smul.addr %s904, 1152
        %s906 = scalar_lea.vmem [#allocation2], %s905
        %p907 = pneg %p161
        %p908 = pneg %p158
        %p909 = scmp.lt.s32.totalorder %s22, 3
        %s910 = scalar_select %p909, %s22, 3
        %s911 = scalar_lea.vmem %s6, %s910
        %p912 = pneg %p187
        %p913 = pneg %p184
        %p914 = pneg %p215
        %p915 = pneg %p212
        %s916 = sand.u32 %s202, 1
        %s917 = sand.u32 %s202, 1
        %s918 = smul.addr %s917, 40
        %s919 = scalar_lea.vmem [#allocation3], %s918
        %p920 = scmp.lt.s32.totalorder %s23, 1
        %s921 = scalar_select %p920, %s23, 1
        %s922 = smul.addr %s921, 41
        %s923 = smul.addr %s922, 8
        %s924 = scalar_lea.vmem %s0, %s923
        %p925 = scmp.lt.s32.totalorder %s22, 3
        %s926 = scalar_select %p925, %s22, 3
        %s927 = scalar_lea.vmem %s6, %s926
        %v928 = vld [vmem:[%s924] sm:$0xff]
        %v929 = vld [vmem:[%s924 + $0x8] sm:$0xff]
        %v930 = vld [vmem:[%s924 + $0x10] sm:$0xff]
        %v931 = vld [vmem:[%s924 + $0x18] sm:$0xff]
        %v932 = vld [vmem:[%s924 + $0x20] sm:$0xff]
        %v933 = vld [vmem:[%s924 + $0x28] sm:$0xff]
        %v934 = vld [vmem:[%s924 + $0x30] sm:$0xff]
        %v935 = vld [vmem:[%s924 + $0x38] sm:$0xff]
        %v936 = vld [vmem:[%s924 + $0x40] sm:$0xff]
        %v937 = vld [vmem:[%s924 + $0x48] sm:$0xff]
        %v938 = vld [vmem:[%s924 + $0x50] sm:$0xff]
        %v939 = vld [vmem:[%s924 + $0x58] sm:$0xff]
        %v940 = vld [vmem:[%s924 + $0x60] sm:$0xff]
        %v941 = vld [vmem:[%s924 + $0x68] sm:$0xff]
        %v942 = vld [vmem:[%s924 + $0x70] sm:$0xff]
        %v943 = vld [vmem:[%s924 + $0x78] sm:$0xff]
        %v944 = vld [vmem:[%s924 + $0x80] sm:$0xff]
        %v945 = vld [vmem:[%s924 + $0x88] sm:$0xff]
        %v946 = vld [vmem:[%s924 + $0x90] sm:$0xff]
        %v947 = vld [vmem:[%s924 + $0x98] sm:$0xff]
        %v948 = vld [vmem:[%s924 + $0xa0] sm:$0xff]
        %v949 = vld [vmem:[%s924 + $0xa8] sm:$0xff]
        %v950 = vld [vmem:[%s924 + $0xb0] sm:$0xff]
        %v951 = vld [vmem:[%s924 + $0xb8] sm:$0xff]
        %v952 = vld [vmem:[%s924 + $0xc0] sm:$0xff]
        %v953 = vld [vmem:[%s924 + $0xc8] sm:$0xff]
        %v954 = vld [vmem:[%s924 + $0xd0] sm:$0xff]
        %v955 = vld [vmem:[%s924 + $0xd8] sm:$0xff]
        %v956 = vld [vmem:[%s924 + $0xe0] sm:$0xff]
        %v957 = vld [vmem:[%s924 + $0xe8] sm:$0xff]
        %v958 = vld [vmem:[%s924 + $0xf0] sm:$0xff]
        %v959 = vld [vmem:[%s924 + $0xf8] sm:$0xff]
        %v960 = vld [vmem:[%s924 + $0x100] sm:$0xff]
        %v961 = vld [vmem:[%s924 + $0x108] sm:$0xff]
        %v962 = vld [vmem:[%s924 + $0x110] sm:$0xff]
        %v963 = vld [vmem:[%s924 + $0x118] sm:$0xff]
        %v964 = vld [vmem:[%s924 + $0x120] sm:$0xff]
        %v965 = vld [vmem:[%s924 + $0x128] sm:$0xff]
        %v966 = vld [vmem:[%s924 + $0x130] sm:$0xff]
        %v967 = vld [vmem:[%s924 + $0x138] sm:$0xff]
        %v968 = vld [vmem:[%s924 + $0x140] sm:$0xf]
        %v969 = vld [vmem:[%s1] sm:$0xff]
        %v970 = vld [vmem:[%s1 + $0x8] sm:$0xff]
        %v971 = vld [vmem:[%s1 + $0x10] sm:$0xff]
        %v972 = vld [vmem:[%s1 + $0x18] sm:$0xff]
        %v973 = vld [vmem:[%s1 + $0x20] sm:$0xff]
        %v974 = vld [vmem:[%s1 + $0x28] sm:$0xff]
        %v975 = vld [vmem:[%s1 + $0x30] sm:$0xff]
        %v976 = vld [vmem:[%s1 + $0x38] sm:$0xff]
        %v977 = vld [vmem:[%s1 + $0x40] sm:$0xff]
        %v978 = vld [vmem:[%s1 + $0x48] sm:$0xff]
        %v979 = vld [vmem:[%s1 + $0x50] sm:$0xff]
        %v980 = vld [vmem:[%s1 + $0x58] sm:$0xff]
        %v981 = vld [vmem:[%s1 + $0x60] sm:$0xff]
        %v982 = vld [vmem:[%s1 + $0x68] sm:$0xff]
        %v983 = vld [vmem:[%s1 + $0x70] sm:$0xff]
        %v984 = vld [vmem:[%s1 + $0x78] sm:$0xff]
        %v985 = vld [vmem:[%s1 + $0x80] sm:$0xff]
        %v986 = vld [vmem:[%s1 + $0x88] sm:$0xff]
        %v987 = vld [vmem:[%s1 + $0x90] sm:$0xff]
        %v988 = vld [vmem:[%s1 + $0x98] sm:$0xff]
        %v989 = vld [vmem:[%s1 + $0xa0] sm:$0x1]
        %v990 = vld [vmem:[%s1 + $0xa8] sm:$0x1]
        %v991 = vld [vmem:[%s2] sm:$0x3]
        %v993 = vlaneseq
        %v994 = vshrl.u32 %v993, 7
        %v995 = vsub.s32 0, %v994
        %v996 = vrot.slane %v991, %v995
        %v997 = vlaneseq
        %v998 = vshrl.u32 %v997, 7
        %v999 = vsub.s32 1, %v998
        %v1000 = vrot.slane %v991, %v999
        %vm1003 = vcmask 662528
        %v1005 = vsel %vm1003, %v928, 0
        %v1008 = vsel %vm1003, %v929, 0
        %v1011 = vsel %vm1003, %v930, 0
        %v1014 = vsel %vm1003, %v931, 0
        %v1017 = vsel %vm1003, %v932, 0
        %v1020 = vsel %vm1003, %v933, 0
        %v1023 = vsel %vm1003, %v934, 0
        %v1026 = vsel %vm1003, %v935, 0
        %v1029 = vsel %vm1003, %v936, 0
        %v1032 = vsel %vm1003, %v937, 0
        %v1035 = vsel %vm1003, %v938, 0
        %v1038 = vsel %vm1003, %v939, 0
        %v1041 = vsel %vm1003, %v940, 0
        %v1044 = vsel %vm1003, %v941, 0
        %v1047 = vsel %vm1003, %v942, 0
        %v1050 = vsel %vm1003, %v943, 0
        %v1053 = vsel %vm1003, %v944, 0
        %v1056 = vsel %vm1003, %v945, 0
        %v1059 = vsel %vm1003, %v946, 0
        %v1062 = vsel %vm1003, %v947, 0
        %v1065 = vsel %vm1003, %v948, 0
        %v1068 = vsel %vm1003, %v949, 0
        %v1071 = vsel %vm1003, %v950, 0
        %v1074 = vsel %vm1003, %v951, 0
        %v1077 = vsel %vm1003, %v952, 0
        %v1080 = vsel %vm1003, %v953, 0
        %v1083 = vsel %vm1003, %v954, 0
        %v1086 = vsel %vm1003, %v955, 0
        %v1089 = vsel %vm1003, %v956, 0
        %v1092 = vsel %vm1003, %v957, 0
        %v1095 = vsel %vm1003, %v958, 0
        %v1098 = vsel %vm1003, %v959, 0
        %v1101 = vsel %vm1003, %v960, 0
        %v1104 = vsel %vm1003, %v961, 0
        %v1107 = vsel %vm1003, %v962, 0
        %v1110 = vsel %vm1003, %v963, 0
        %v1113 = vsel %vm1003, %v964, 0
        %v1116 = vsel %vm1003, %v965, 0
        %v1119 = vsel %vm1003, %v966, 0
        %v1122 = vsel %vm1003, %v967, 0
        %v1125 = vsel %vm1003, %v968, 0
        %vm1127 = vcmask 1040384
        %v1129 = vsel %vm1127, %v989, 0
        %v1132 = vsel %vm1127, %v990, 0
        %1134 = vmatprep.subr.mxu0 0.0
        %1135 = vmatpush1.msra.mxu0 0.0
        %1136 = vmatprep.subr.mxu0 0.0
        %1137 = vmatpush1.msra.mxu0 0.0
        %1138 = vmatprep.subr.mxu0 0.0
        %1139 = vmatpush1.msra.mxu0 0.0
        %1140 = vmatprep.subr.mxu0 0.0
        %1141 = vmatpush1.msra.mxu0 0.0
        %1142 = vmatprep.subr.mxu0 0.0
        %1143 = vmatpush1.msra.mxu0 0.0
        %1144 = vmatprep.subr.mxu0 %v1132
        %1145 = vmatpush1.msra.mxu0 %v1129
        %1146 = vmatprep.subr.mxu0 %v988
        %1147 = vmatpush1.msra.mxu0 %v987
        %1148 = vmatprep.subr.mxu0 %v986
        %1149 = vmatpush1.msra.mxu0 %v985
        %1150 = vmatprep.subr.mxu0 %v984
        %1151 = vmatpush1.msra.mxu0 %v983
        %1152 = vmatprep.subr.mxu0 %v982
        %1153 = vmatpush1.msra.mxu0 %v981
        %1154 = vmatprep.subr.mxu0 %v980
        %1155 = vmatpush1.msra.mxu0 %v979
        %1156 = vmatprep.subr.mxu0 %v978
        %1157 = vmatpush1.msra.mxu0 %v977
        %1158 = vmatprep.subr.mxu0 %v976
        %1159 = vmatpush1.msra.mxu0 %v975
        %1160 = vmatprep.subr.mxu0 %v974
        %1161 = vmatpush1.msra.mxu0 %v973
        %1162 = vmatprep.subr.mxu0 %v972
        %1163 = vmatpush1.msra.mxu0 %v971
        %1164 = vmatprep.subr.mxu0 %v970
        %1165 = vmatpush1.msra.mxu0 %v969
        %1166 = vmatprep.subr.mxu0 0.0
        %1167 = vmatpush2.msra.mxu0 0.0
        %1168 = vmatprep.subr.mxu0 0.0
        %1169 = vmatpush2.msra.mxu0 0.0
        %1170 = vmatprep.subr.mxu0 0.0
        %1171 = vmatpush2.msra.mxu0 0.0
        %1172 = vmatprep.subr.mxu0 0.0
        %1173 = vmatpush2.msra.mxu0 0.0
        %1174 = vmatprep.subr.mxu0 0.0
        %1175 = vmatpush2.msra.mxu0 0.0
        %1176 = vmatprep.subr.mxu0 0.0
        %1177 = vmatpush2.msra.mxu0 0.0
        %1178 = vmatprep.subr.mxu0 0.0
        %1179 = vmatpush2.msra.mxu0 0.0
        %1180 = vmatprep.subr.mxu0 0.0
        %1181 = vmatpush2.msra.mxu0 0.0
        %1182 = vmatprep.subr.mxu0 0.0
        %1183 = vmatpush2.msra.mxu0 0.0
        %1184 = vmatprep.subr.mxu0 0.0
        %1185 = vmatpush2.msra.mxu0 0.0
        %1186 = vmatprep.subr.mxu0 0.0
        %1187 = vmatpush2.msra.mxu0 0.0
        %1188 = vmatprep.subr.mxu0 0.0
        %1189 = vmatpush2.msra.mxu0 0.0
        %1190 = vmatprep.subr.mxu0 0.0
        %1191 = vmatpush2.msra.mxu0 0.0
        %1192 = vmatprep.subr.mxu0 0.0
        %1193 = vmatpush2.msra.mxu0 0.0
        %1194 = vmatprep.subr.mxu0 0.0
        %1195 = vmatpush2.msra.mxu0 0.0
        %1196 = vmatprep.subr.mxu0 0.0
        %1197 = vmatpush2.msra.mxu0 0.0
        %1198 = vmatprep.mubr.f32.mxu0 0.0
        %1199 = vmatmul.mubr.f32.gmra.mxu0 %v1005
        %v1200 = vpop.f32.mrf.mxu0
        %v1201 = vadd.f32 %v996, %v1200
        %v1202 = vpop.f32.mrf.mxu0
        %v1203 = vadd.f32 %v1000, %v1202
        %1204 = vmatprep.mubr.f32.mxu0 0.0
        %1205 = vmatmul.mubr.f32.gmra.mxu0 %v1008
        %v1206 = vpop.f32.mrf.mxu0
        %v1207 = vadd.f32 %v996, %v1206
        %v1208 = vpop.f32.mrf.mxu0
        %v1209 = vadd.f32 %v1000, %v1208
        %1210 = vmatprep.mubr.f32.mxu0 0.0
        %1211 = vmatmul.mubr.f32.gmra.mxu0 %v1011
        %v1212 = vpop.f32.mrf.mxu0
        %v1213 = vadd.f32 %v996, %v1212
        %v1214 = vpop.f32.mrf.mxu0
        %v1215 = vadd.f32 %v1000, %v1214
        %1216 = vmatprep.mubr.f32.mxu0 0.0
        %1217 = vmatmul.mubr.f32.gmra.mxu0 %v1014
        %v1218 = vpop.f32.mrf.mxu0
        %v1219 = vadd.f32 %v996, %v1218
        %v1220 = vpop.f32.mrf.mxu0
        %v1221 = vadd.f32 %v1000, %v1220
        %1222 = vmatprep.mubr.f32.mxu0 0.0
        %1223 = vmatmul.mubr.f32.gmra.mxu0 %v1017
        %v1224 = vpop.f32.mrf.mxu0
        %v1225 = vadd.f32 %v996, %v1224
        %v1226 = vpop.f32.mrf.mxu0
        %v1227 = vadd.f32 %v1000, %v1226
        %1228 = vmatprep.mubr.f32.mxu0 0.0
        %1229 = vmatmul.mubr.f32.gmra.mxu0 %v1020
        %v1230 = vpop.f32.mrf.mxu0
        %v1231 = vadd.f32 %v996, %v1230
        %v1232 = vpop.f32.mrf.mxu0
        %v1233 = vadd.f32 %v1000, %v1232
        %1234 = vmatprep.mubr.f32.mxu0 0.0
        %1235 = vmatmul.mubr.f32.gmra.mxu0 %v1023
        %v1236 = vpop.f32.mrf.mxu0
        %v1237 = vadd.f32 %v996, %v1236
        %v1238 = vpop.f32.mrf.mxu0
        %v1239 = vadd.f32 %v1000, %v1238
        %1240 = vmatprep.mubr.f32.mxu0 0.0
        %1241 = vmatmul.mubr.f32.gmra.mxu0 %v1026
        %v1242 = vpop.f32.mrf.mxu0
        %v1243 = vadd.f32 %v996, %v1242
        %v1244 = vpop.f32.mrf.mxu0
        %v1245 = vadd.f32 %v1000, %v1244
        %1246 = vmatprep.mubr.f32.mxu0 0.0
        %1247 = vmatmul.mubr.f32.gmra.mxu0 %v1029
        %v1248 = vpop.f32.mrf.mxu0
        %v1249 = vadd.f32 %v996, %v1248
        %v1250 = vpop.f32.mrf.mxu0
        %v1251 = vadd.f32 %v1000, %v1250
        %1252 = vmatprep.mubr.f32.mxu0 0.0
        %1253 = vmatmul.mubr.f32.gmra.mxu0 %v1032
        %v1254 = vpop.f32.mrf.mxu0
        %v1255 = vadd.f32 %v996, %v1254
        %v1256 = vpop.f32.mrf.mxu0
        %v1257 = vadd.f32 %v1000, %v1256
        %1258 = vmatprep.mubr.f32.mxu0 0.0
        %1259 = vmatmul.mubr.f32.gmra.mxu0 %v1035
        %v1260 = vpop.f32.mrf.mxu0
        %v1261 = vadd.f32 %v996, %v1260
        %v1262 = vpop.f32.mrf.mxu0
        %v1263 = vadd.f32 %v1000, %v1262
        %1264 = vmatprep.mubr.f32.mxu0 0.0
        %1265 = vmatmul.mubr.f32.gmra.mxu0 %v1038
        %v1266 = vpop.f32.mrf.mxu0
        %v1267 = vadd.f32 %v996, %v1266
        %v1268 = vpop.f32.mrf.mxu0
        %v1269 = vadd.f32 %v1000, %v1268
        %1270 = vmatprep.mubr.f32.mxu0 0.0
        %1271 = vmatmul.mubr.f32.gmra.mxu0 %v1041
        %v1272 = vpop.f32.mrf.mxu0
        %v1273 = vadd.f32 %v996, %v1272
        %v1274 = vpop.f32.mrf.mxu0
        %v1275 = vadd.f32 %v1000, %v1274
        %1276 = vmatprep.mubr.f32.mxu0 0.0
        %1277 = vmatmul.mubr.f32.gmra.mxu0 %v1044
        %v1278 = vpop.f32.mrf.mxu0
        %v1279 = vadd.f32 %v996, %v1278
        %v1280 = vpop.f32.mrf.mxu0
        %v1281 = vadd.f32 %v1000, %v1280
        %1282 = vmatprep.mubr.f32.mxu0 0.0
        %1283 = vmatmul.mubr.f32.gmra.mxu0 %v1047
        %v1284 = vpop.f32.mrf.mxu0
        %v1285 = vadd.f32 %v996, %v1284
        %v1286 = vpop.f32.mrf.mxu0
        %v1287 = vadd.f32 %v1000, %v1286
        %1288 = vmatprep.mubr.f32.mxu0 0.0
        %1289 = vmatmul.mubr.f32.gmra.mxu0 %v1050
        %v1290 = vpop.f32.mrf.mxu0
        %v1291 = vadd.f32 %v996, %v1290
        %v1292 = vpop.f32.mrf.mxu0
        %v1293 = vadd.f32 %v1000, %v1292
        %1294 = vmatprep.mubr.f32.mxu0 0.0
        %1295 = vmatmul.mubr.f32.gmra.mxu0 %v1053
        %v1296 = vpop.f32.mrf.mxu0
        %v1297 = vadd.f32 %v996, %v1296
        %v1298 = vpop.f32.mrf.mxu0
        %v1299 = vadd.f32 %v1000, %v1298
        %1300 = vmatprep.mubr.f32.mxu0 0.0
        %1301 = vmatmul.mubr.f32.gmra.mxu0 %v1056
        %v1302 = vpop.f32.mrf.mxu0
        %v1303 = vadd.f32 %v996, %v1302
        %v1304 = vpop.f32.mrf.mxu0
        %v1305 = vadd.f32 %v1000, %v1304
        %1306 = vmatprep.mubr.f32.mxu0 0.0
        %1307 = vmatmul.mubr.f32.gmra.mxu0 %v1059
        %v1308 = vpop.f32.mrf.mxu0
        %v1309 = vadd.f32 %v996, %v1308
        %v1310 = vpop.f32.mrf.mxu0
        %v1311 = vadd.f32 %v1000, %v1310
        %1312 = vmatprep.mubr.f32.mxu0 0.0
        %1313 = vmatmul.mubr.f32.gmra.mxu0 %v1062
        %v1314 = vpop.f32.mrf.mxu0
        %v1315 = vadd.f32 %v996, %v1314
        %v1316 = vpop.f32.mrf.mxu0
        %v1317 = vadd.f32 %v1000, %v1316
        %1318 = vmatprep.mubr.f32.mxu0 0.0
        %1319 = vmatmul.mubr.f32.gmra.mxu0 %v1065
        %v1320 = vpop.f32.mrf.mxu0
        %v1321 = vadd.f32 %v996, %v1320
        %v1322 = vpop.f32.mrf.mxu0
        %v1323 = vadd.f32 %v1000, %v1322
        %1324 = vmatprep.mubr.f32.mxu0 0.0
        %1325 = vmatmul.mubr.f32.gmra.mxu0 %v1068
        %v1326 = vpop.f32.mrf.mxu0
        %v1327 = vadd.f32 %v996, %v1326
        %v1328 = vpop.f32.mrf.mxu0
        %v1329 = vadd.f32 %v1000, %v1328
        %1330 = vmatprep.mubr.f32.mxu0 0.0
        %1331 = vmatmul.mubr.f32.gmra.mxu0 %v1071
        %v1332 = vpop.f32.mrf.mxu0
        %v1333 = vadd.f32 %v996, %v1332
        %v1334 = vpop.f32.mrf.mxu0
        %v1335 = vadd.f32 %v1000, %v1334
        %1336 = vmatprep.mubr.f32.mxu0 0.0
        %1337 = vmatmul.mubr.f32.gmra.mxu0 %v1074
        %v1338 = vpop.f32.mrf.mxu0
        %v1339 = vadd.f32 %v996, %v1338
        %v1340 = vpop.f32.mrf.mxu0
        %v1341 = vadd.f32 %v1000, %v1340
        %1342 = vmatprep.mubr.f32.mxu0 0.0
        %1343 = vmatmul.mubr.f32.gmra.mxu0 %v1077
        %v1344 = vpop.f32.mrf.mxu0
        %v1345 = vadd.f32 %v996, %v1344
        %v1346 = vpop.f32.mrf.mxu0
        %v1347 = vadd.f32 %v1000, %v1346
        %1348 = vmatprep.mubr.f32.mxu0 0.0
        %1349 = vmatmul.mubr.f32.gmra.mxu0 %v1080
        %v1350 = vpop.f32.mrf.mxu0
        %v1351 = vadd.f32 %v996, %v1350
        %v1352 = vpop.f32.mrf.mxu0
        %v1353 = vadd.f32 %v1000, %v1352
        %1354 = vmatprep.mubr.f32.mxu0 0.0
        %1355 = vmatmul.mubr.f32.gmra.mxu0 %v1083
        %v1356 = vpop.f32.mrf.mxu0
        %v1357 = vadd.f32 %v996, %v1356
        %v1358 = vpop.f32.mrf.mxu0
        %v1359 = vadd.f32 %v1000, %v1358
        %1360 = vmatprep.mubr.f32.mxu0 0.0
        %1361 = vmatmul.mubr.f32.gmra.mxu0 %v1086
        %v1362 = vpop.f32.mrf.mxu0
        %v1363 = vadd.f32 %v996, %v1362
        %v1364 = vpop.f32.mrf.mxu0
        %v1365 = vadd.f32 %v1000, %v1364
        %1366 = vmatprep.mubr.f32.mxu0 0.0
        %1367 = vmatmul.mubr.f32.gmra.mxu0 %v1089
        %v1368 = vpop.f32.mrf.mxu0
        %v1369 = vadd.f32 %v996, %v1368
        %v1370 = vpop.f32.mrf.mxu0
        %v1371 = vadd.f32 %v1000, %v1370
        %1372 = vmatprep.mubr.f32.mxu0 0.0
        %1373 = vmatmul.mubr.f32.gmra.mxu0 %v1092
        %v1374 = vpop.f32.mrf.mxu0
        %v1375 = vadd.f32 %v996, %v1374
        %v1376 = vpop.f32.mrf.mxu0
        %v1377 = vadd.f32 %v1000, %v1376
        %1378 = vmatprep.mubr.f32.mxu0 0.0
        %1379 = vmatmul.mubr.f32.gmra.mxu0 %v1095
        %v1380 = vpop.f32.mrf.mxu0
        %v1381 = vadd.f32 %v996, %v1380
        %v1382 = vpop.f32.mrf.mxu0
        %v1383 = vadd.f32 %v1000, %v1382
        %1384 = vmatprep.mubr.f32.mxu0 0.0
        %1385 = vmatmul.mubr.f32.gmra.mxu0 %v1098
        %v1386 = vpop.f32.mrf.mxu0
        %v1387 = vadd.f32 %v996, %v1386
        %v1388 = vpop.f32.mrf.mxu0
        %v1389 = vadd.f32 %v1000, %v1388
        %1390 = vmatprep.mubr.f32.mxu0 0.0
        %1391 = vmatmul.mubr.f32.gmra.mxu0 %v1101
        %v1392 = vpop.f32.mrf.mxu0
        %v1393 = vadd.f32 %v996, %v1392
        %v1394 = vpop.f32.mrf.mxu0
        %v1395 = vadd.f32 %v1000, %v1394
        %1396 = vmatprep.mubr.f32.mxu0 0.0
        %1397 = vmatmul.mubr.f32.gmra.mxu0 %v1104
        %v1398 = vpop.f32.mrf.mxu0
        %v1399 = vadd.f32 %v996, %v1398
        %v1400 = vpop.f32.mrf.mxu0
        %v1401 = vadd.f32 %v1000, %v1400
        %1402 = vmatprep.mubr.f32.mxu0 0.0
        %1403 = vmatmul.mubr.f32.gmra.mxu0 %v1107
        %v1404 = vpop.f32.mrf.mxu0
        %v1405 = vadd.f32 %v996, %v1404
        %v1406 = vpop.f32.mrf.mxu0
        %v1407 = vadd.f32 %v1000, %v1406
        %1408 = vmatprep.mubr.f32.mxu0 0.0
        %1409 = vmatmul.mubr.f32.gmra.mxu0 %v1110
        %v1410 = vpop.f32.mrf.mxu0
        %v1411 = vadd.f32 %v996, %v1410
        %v1412 = vpop.f32.mrf.mxu0
        %v1413 = vadd.f32 %v1000, %v1412
        %1414 = vmatprep.mubr.f32.mxu0 0.0
        %1415 = vmatmul.mubr.f32.gmra.mxu0 %v1113
        %v1416 = vpop.f32.mrf.mxu0
        %v1417 = vadd.f32 %v996, %v1416
        %v1418 = vpop.f32.mrf.mxu0
        %v1419 = vadd.f32 %v1000, %v1418
        %1420 = vmatprep.mubr.f32.mxu0 0.0
        %1421 = vmatmul.mubr.f32.gmra.mxu0 %v1116
        %v1422 = vpop.f32.mrf.mxu0
        %v1423 = vadd.f32 %v996, %v1422
        %v1424 = vpop.f32.mrf.mxu0
        %v1425 = vadd.f32 %v1000, %v1424
        %1426 = vmatprep.mubr.f32.mxu0 0.0
        %1427 = vmatmul.mubr.f32.gmra.mxu0 %v1119
        %v1428 = vpop.f32.mrf.mxu0
        %v1429 = vadd.f32 %v996, %v1428
        %v1430 = vpop.f32.mrf.mxu0
        %v1431 = vadd.f32 %v1000, %v1430
        %1432 = vmatprep.mubr.f32.mxu0 0.0
        %1433 = vmatmul.mubr.f32.gmra.mxu0 %v1122
        %v1434 = vpop.f32.mrf.mxu0
        %v1435 = vadd.f32 %v996, %v1434
        %v1436 = vpop.f32.mrf.mxu0
        %v1437 = vadd.f32 %v1000, %v1436
        %1438 = vmatprep.mubr.f32.mxu0 0.0
        %1439 = vmatmul.mubr.f32.gmra.mxu0 %v1125
        %v1440 = vpop.f32.mrf.mxu0
        %v1441 = vadd.f32 %v996, %v1440
        %v1442 = vpop.f32.mrf.mxu0
        %v1443 = vadd.f32 %v1000, %v1442
        %1444 = vdwg.mxu0
        %v1445 = vtanh.pop %v1201
        %v1446 = vtanh.pop %v1203
        %v1447 = vtanh.pop %v1207
        %v1448 = vtanh.pop %v1209
        %v1449 = vtanh.pop %v1213
        %v1450 = vtanh.pop %v1215
        %v1451 = vtanh.pop %v1219
        %v1452 = vtanh.pop %v1221
        %v1453 = vtanh.pop %v1225
        %v1454 = vtanh.pop %v1227
        %v1455 = vtanh.pop %v1231
        %v1456 = vtanh.pop %v1233
        %v1457 = vtanh.pop %v1237
        %v1458 = vtanh.pop %v1239
        %v1459 = vtanh.pop %v1243
        %v1460 = vtanh.pop %v1245
        %v1461 = vtanh.pop %v1249
        %v1462 = vtanh.pop %v1251
        %v1463 = vtanh.pop %v1255
        %v1464 = vtanh.pop %v1257
        %v1465 = vtanh.pop %v1261
        %v1466 = vtanh.pop %v1263
        %v1467 = vtanh.pop %v1267
        %v1468 = vtanh.pop %v1269
        %v1469 = vtanh.pop %v1273
        %v1470 = vtanh.pop %v1275
        %v1471 = vtanh.pop %v1279
        %v1472 = vtanh.pop %v1281
        %v1473 = vtanh.pop %v1285
        %v1474 = vtanh.pop %v1287
        %v1475 = vtanh.pop %v1291
        %v1476 = vtanh.pop %v1293
        %v1477 = vtanh.pop %v1297
        %v1478 = vtanh.pop %v1299
        %v1479 = vtanh.pop %v1303
        %v1480 = vtanh.pop %v1305
        %v1481 = vtanh.pop %v1309
        %v1482 = vtanh.pop %v1311
        %v1483 = vtanh.pop %v1315
        %v1484 = vtanh.pop %v1317
        %v1485 = vtanh.pop %v1321
        %v1486 = vtanh.pop %v1323
        %v1487 = vtanh.pop %v1327
        %v1488 = vtanh.pop %v1329
        %v1489 = vtanh.pop %v1333
        %v1490 = vtanh.pop %v1335
        %v1491 = vtanh.pop %v1339
        %v1492 = vtanh.pop %v1341
        %v1493 = vtanh.pop %v1345
        %v1494 = vtanh.pop %v1347
        %v1495 = vtanh.pop %v1351
        %v1496 = vtanh.pop %v1353
        %v1497 = vtanh.pop %v1357
        %v1498 = vtanh.pop %v1359
        %v1499 = vtanh.pop %v1363
        %v1500 = vtanh.pop %v1365
        %v1501 = vtanh.pop %v1369
        %v1502 = vtanh.pop %v1371
        %v1503 = vtanh.pop %v1375
        %v1504 = vtanh.pop %v1377
        %v1505 = vtanh.pop %v1381
        %v1506 = vtanh.pop %v1383
        %v1507 = vtanh.pop %v1387
        %v1508 = vtanh.pop %v1389
        %v1509 = vtanh.pop %v1393
        %v1510 = vtanh.pop %v1395
        %v1511 = vtanh.pop %v1399
        %v1512 = vtanh.pop %v1401
        %v1513 = vtanh.pop %v1405
        %v1514 = vtanh.pop %v1407
        %v1515 = vtanh.pop %v1411
        %v1516 = vtanh.pop %v1413
        %v1517 = vtanh.pop %v1417
        %v1518 = vtanh.pop %v1419
        %v1519 = vtanh.pop %v1423
        %v1520 = vtanh.pop %v1425
        %v1521 = vtanh.pop %v1429
        %v1522 = vtanh.pop %v1431
        %v1523 = vtanh.pop %v1435
        %v1524 = vtanh.pop %v1437
        %v1525 = vtanh.pop %v1441
        %v1526 = vtanh.pop %v1443
        %v1527 = vld [vmem:[%s3] sm:$0xff]
        %v1528 = vld [vmem:[%s3 + $0x8] sm:$0xff]
        %v1529 = vld [vmem:[%s3 + $0x10] sm:$0xff]
        %v1530 = vld [vmem:[%s3 + $0x18] sm:$0xff]
        %v1531 = vld [vmem:[%s3 + $0x20] sm:$0xff]
        %v1532 = vld [vmem:[%s3 + $0x28] sm:$0xff]
        %v1533 = vld [vmem:[%s3 + $0x30] sm:$0xff]
        %v1534 = vld [vmem:[%s3 + $0x38] sm:$0xff]
        %v1535 = vld [vmem:[%s3 + $0x40] sm:$0xff]
        %v1536 = vld [vmem:[%s3 + $0x48] sm:$0xff]
        %v1537 = vld [vmem:[%s3 + $0x50] sm:$0xff]
        %v1538 = vld [vmem:[%s3 + $0x58] sm:$0xff]
        %v1539 = vld [vmem:[%s3 + $0x60] sm:$0xff]
        %v1540 = vld [vmem:[%s3 + $0x68] sm:$0xff]
        %v1541 = vld [vmem:[%s3 + $0x70] sm:$0xff]
        %v1542 = vld [vmem:[%s3 + $0x78] sm:$0xff]
        %v1543 = vld [vmem:[%s3 + $0x80] sm:$0xff]
        %v1544 = vld [vmem:[%s3 + $0x88] sm:$0xff]
        %v1545 = vld [vmem:[%s4] sm:$0x1]
        %v1547 = vlaneseq
        %v1548 = vshrl.u32 %v1547, 7
        %v1549 = vsub.s32 0, %v1548
        %v1550 = vrot.slane %v1545, %v1549
        %vm1552 = vcmask 130048
        %v1554 = vsel %vm1552, %v1446, 0
        %v1557 = vsel %vm1552, %v1448, 0
        %v1560 = vsel %vm1552, %v1450, 0
        %v1563 = vsel %vm1552, %v1452, 0
        %v1566 = vsel %vm1552, %v1454, 0
        %v1569 = vsel %vm1552, %v1456, 0
        %v1572 = vsel %vm1552, %v1458, 0
        %v1575 = vsel %vm1552, %v1460, 0
        %v1578 = vsel %vm1552, %v1462, 0
        %v1581 = vsel %vm1552, %v1464, 0
        %v1584 = vsel %vm1552, %v1466, 0
        %v1587 = vsel %vm1552, %v1468, 0
        %v1590 = vsel %vm1552, %v1470, 0
        %v1593 = vsel %vm1552, %v1472, 0
        %v1596 = vsel %vm1552, %v1474, 0
        %v1599 = vsel %vm1552, %v1476, 0
        %v1602 = vsel %vm1552, %v1478, 0
        %v1605 = vsel %vm1552, %v1480, 0
        %v1608 = vsel %vm1552, %v1482, 0
        %v1611 = vsel %vm1552, %v1484, 0
        %v1614 = vsel %vm1552, %v1486, 0
        %v1617 = vsel %vm1552, %v1488, 0
        %v1620 = vsel %vm1552, %v1490, 0
        %v1623 = vsel %vm1552, %v1492, 0
        %v1626 = vsel %vm1552, %v1494, 0
        %v1629 = vsel %vm1552, %v1496, 0
        %v1632 = vsel %vm1552, %v1498, 0
        %v1635 = vsel %vm1552, %v1500, 0
        %v1638 = vsel %vm1552, %v1502, 0
        %v1641 = vsel %vm1552, %v1504, 0
        %v1644 = vsel %vm1552, %v1506, 0
        %v1647 = vsel %vm1552, %v1508, 0
        %v1650 = vsel %vm1552, %v1510, 0
        %v1653 = vsel %vm1552, %v1512, 0
        %v1656 = vsel %vm1552, %v1514, 0
        %v1659 = vsel %vm1552, %v1516, 0
        %v1662 = vsel %vm1552, %v1518, 0
        %v1665 = vsel %vm1552, %v1520, 0
        %v1668 = vsel %vm1552, %v1522, 0
        %v1671 = vsel %vm1552, %v1524, 0
        %v1674 = vsel %vm1552, %v1526, 0
        %1676 = vmatprep.subr.mxu0 0.0
        %1677 = vmatpush1.msra.mxu0 %v1542
        %1678 = vmatprep.subr.mxu0 0.0
        %1679 = vmatpush1.msra.mxu0 %v1541
        %1680 = vmatprep.subr.mxu0 0.0
        %1681 = vmatpush1.msra.mxu0 %v1540
        %1682 = vmatprep.subr.mxu0 0.0
        %1683 = vmatpush1.msra.mxu0 %v1539
        %1684 = vmatprep.subr.mxu0 0.0
        %1685 = vmatpush1.msra.mxu0 %v1538
        %1686 = vmatprep.subr.mxu0 0.0
        %1687 = vmatpush1.msra.mxu0 %v1537
        %1688 = vmatprep.subr.mxu0 0.0
        %1689 = vmatpush1.msra.mxu0 %v1536
        %1690 = vmatprep.subr.mxu0 0.0
        %1691 = vmatpush1.msra.mxu0 %v1535
        %1692 = vmatprep.subr.mxu0 0.0
        %1693 = vmatpush1.msra.mxu0 %v1534
        %1694 = vmatprep.subr.mxu0 0.0
        %1695 = vmatpush1.msra.mxu0 %v1533
        %1696 = vmatprep.subr.mxu0 0.0
        %1697 = vmatpush1.msra.mxu0 %v1532
        %1698 = vmatprep.subr.mxu0 0.0
        %1699 = vmatpush1.msra.mxu0 %v1531
        %1700 = vmatprep.subr.mxu0 0.0
        %1701 = vmatpush1.msra.mxu0 %v1530
        %1702 = vmatprep.subr.mxu0 0.0
        %1703 = vmatpush1.msra.mxu0 %v1529
        %1704 = vmatprep.subr.mxu0 0.0
        %1705 = vmatpush1.msra.mxu0 %v1528
        %1706 = vmatprep.subr.mxu0 0.0
        %1707 = vmatpush1.msra.mxu0 %v1527
        %1708 = vmatprep.subr.mxu0 0.0
        %1709 = vmatpush2.msra.mxu0 0.0
        %1710 = vmatprep.subr.mxu0 0.0
        %1711 = vmatpush2.msra.mxu0 0.0
        %1712 = vmatprep.subr.mxu0 0.0
        %1713 = vmatpush2.msra.mxu0 0.0
        %1714 = vmatprep.subr.mxu0 0.0
        %1715 = vmatpush2.msra.mxu0 0.0
        %1716 = vmatprep.subr.mxu0 0.0
        %1717 = vmatpush2.msra.mxu0 0.0
        %1718 = vmatprep.subr.mxu0 0.0
        %1719 = vmatpush2.msra.mxu0 0.0
        %1720 = vmatprep.subr.mxu0 0.0
        %1721 = vmatpush2.msra.mxu0 0.0
        %1722 = vmatprep.subr.mxu0 0.0
        %1723 = vmatpush2.msra.mxu0 0.0
        %1724 = vmatprep.subr.mxu0 0.0
        %1725 = vmatpush2.msra.mxu0 0.0
        %1726 = vmatprep.subr.mxu0 0.0
        %1727 = vmatpush2.msra.mxu0 0.0
        %1728 = vmatprep.subr.mxu0 0.0
        %1729 = vmatpush2.msra.mxu0 0.0
        %1730 = vmatprep.subr.mxu0 0.0
        %1731 = vmatpush2.msra.mxu0 0.0
        %1732 = vmatprep.subr.mxu0 0.0
        %1733 = vmatpush2.msra.mxu0 0.0
        %1734 = vmatprep.subr.mxu0 0.0
        %1735 = vmatpush2.msra.mxu0 0.0
        %1736 = vmatprep.subr.mxu0 0.0
        %1737 = vmatpush2.msra.mxu0 %v1544
        %1738 = vmatprep.subr.mxu0 0.0
        %1739 = vmatpush2.msra.mxu0 %v1543
        %1740 = vmatprep.mubr.f32.mxu0 %v1554
        %1741 = vmatmul.mubr.f32.gmra.mxu0 %v1445
        %v1742 = vpop.f32.mrf.mxu0
        %v1743 = vadd.f32 %v1550, %v1742
        %v1744 = vpop.f32.mrf.mxu0
        %1745 = vmatprep.mubr.f32.mxu0 %v1557
        %1746 = vmatmul.mubr.f32.gmra.mxu0 %v1447
        %v1747 = vpop.f32.mrf.mxu0
        %v1748 = vadd.f32 %v1550, %v1747
        %v1749 = vpop.f32.mrf.mxu0
        %1750 = vmatprep.mubr.f32.mxu0 %v1560
        %1751 = vmatmul.mubr.f32.gmra.mxu0 %v1449
        %v1752 = vpop.f32.mrf.mxu0
        %v1753 = vadd.f32 %v1550, %v1752
        %v1754 = vpop.f32.mrf.mxu0
        %1755 = vmatprep.mubr.f32.mxu0 %v1563
        %1756 = vmatmul.mubr.f32.gmra.mxu0 %v1451
        %v1757 = vpop.f32.mrf.mxu0
        %v1758 = vadd.f32 %v1550, %v1757
        %v1759 = vpop.f32.mrf.mxu0
        %1760 = vmatprep.mubr.f32.mxu0 %v1566
        %1761 = vmatmul.mubr.f32.gmra.mxu0 %v1453
        %v1762 = vpop.f32.mrf.mxu0
        %v1763 = vadd.f32 %v1550, %v1762
        %v1764 = vpop.f32.mrf.mxu0
        %1765 = vmatprep.mubr.f32.mxu0 %v1569
        %1766 = vmatmul.mubr.f32.gmra.mxu0 %v1455
        %v1767 = vpop.f32.mrf.mxu0
        %v1768 = vadd.f32 %v1550, %v1767
        %v1769 = vpop.f32.mrf.mxu0
        %1770 = vmatprep.mubr.f32.mxu0 %v1572
        %1771 = vmatmul.mubr.f32.gmra.mxu0 %v1457
        %v1772 = vpop.f32.mrf.mxu0
        %v1773 = vadd.f32 %v1550, %v1772
        %v1774 = vpop.f32.mrf.mxu0
        %1775 = vmatprep.mubr.f32.mxu0 %v1575
        %1776 = vmatmul.mubr.f32.gmra.mxu0 %v1459
        %v1777 = vpop.f32.mrf.mxu0
        %v1778 = vadd.f32 %v1550, %v1777
        %v1779 = vpop.f32.mrf.mxu0
        %1780 = vmatprep.mubr.f32.mxu0 %v1578
        %1781 = vmatmul.mubr.f32.gmra.mxu0 %v1461
        %v1782 = vpop.f32.mrf.mxu0
        %v1783 = vadd.f32 %v1550, %v1782
        %v1784 = vpop.f32.mrf.mxu0
        %1785 = vmatprep.mubr.f32.mxu0 %v1581
        %1786 = vmatmul.mubr.f32.gmra.mxu0 %v1463
        %v1787 = vpop.f32.mrf.mxu0
        %v1788 = vadd.f32 %v1550, %v1787
        %v1789 = vpop.f32.mrf.mxu0
        %1790 = vmatprep.mubr.f32.mxu0 %v1584
        %1791 = vmatmul.mubr.f32.gmra.mxu0 %v1465
        %v1792 = vpop.f32.mrf.mxu0
        %v1793 = vadd.f32 %v1550, %v1792
        %v1794 = vpop.f32.mrf.mxu0
        %1795 = vmatprep.mubr.f32.mxu0 %v1587
        %1796 = vmatmul.mubr.f32.gmra.mxu0 %v1467
        %v1797 = vpop.f32.mrf.mxu0
        %v1798 = vadd.f32 %v1550, %v1797
        %v1799 = vpop.f32.mrf.mxu0
        %1800 = vmatprep.mubr.f32.mxu0 %v1590
        %1801 = vmatmul.mubr.f32.gmra.mxu0 %v1469
        %v1802 = vpop.f32.mrf.mxu0
        %v1803 = vadd.f32 %v1550, %v1802
        %v1804 = vpop.f32.mrf.mxu0
        %1805 = vmatprep.mubr.f32.mxu0 %v1593
        %1806 = vmatmul.mubr.f32.gmra.mxu0 %v1471
        %v1807 = vpop.f32.mrf.mxu0
        %v1808 = vadd.f32 %v1550, %v1807
        %v1809 = vpop.f32.mrf.mxu0
        %1810 = vmatprep.mubr.f32.mxu0 %v1596
        %1811 = vmatmul.mubr.f32.gmra.mxu0 %v1473
        %v1812 = vpop.f32.mrf.mxu0
        %v1813 = vadd.f32 %v1550, %v1812
        %v1814 = vpop.f32.mrf.mxu0
        %1815 = vmatprep.mubr.f32.mxu0 %v1599
        %1816 = vmatmul.mubr.f32.gmra.mxu0 %v1475
        %v1817 = vpop.f32.mrf.mxu0
        %v1818 = vadd.f32 %v1550, %v1817
        %v1819 = vpop.f32.mrf.mxu0
        %1820 = vmatprep.mubr.f32.mxu0 %v1602
        %1821 = vmatmul.mubr.f32.gmra.mxu0 %v1477
        %v1822 = vpop.f32.mrf.mxu0
        %v1823 = vadd.f32 %v1550, %v1822
        %v1824 = vpop.f32.mrf.mxu0
        %1825 = vmatprep.mubr.f32.mxu0 %v1605
        %1826 = vmatmul.mubr.f32.gmra.mxu0 %v1479
        %v1827 = vpop.f32.mrf.mxu0
        %v1828 = vadd.f32 %v1550, %v1827
        %v1829 = vpop.f32.mrf.mxu0
        %1830 = vmatprep.mubr.f32.mxu0 %v1608
        %1831 = vmatmul.mubr.f32.gmra.mxu0 %v1481
        %v1832 = vpop.f32.mrf.mxu0
        %v1833 = vadd.f32 %v1550, %v1832
        %v1834 = vpop.f32.mrf.mxu0
        %1835 = vmatprep.mubr.f32.mxu0 %v1611
        %1836 = vmatmul.mubr.f32.gmra.mxu0 %v1483
        %v1837 = vpop.f32.mrf.mxu0
        %v1838 = vadd.f32 %v1550, %v1837
        %v1839 = vpop.f32.mrf.mxu0
        %1840 = vmatprep.mubr.f32.mxu0 %v1614
        %1841 = vmatmul.mubr.f32.gmra.mxu0 %v1485
        %v1842 = vpop.f32.mrf.mxu0
        %v1843 = vadd.f32 %v1550, %v1842
        %v1844 = vpop.f32.mrf.mxu0
        %1845 = vmatprep.mubr.f32.mxu0 %v1617
        %1846 = vmatmul.mubr.f32.gmra.mxu0 %v1487
        %v1847 = vpop.f32.mrf.mxu0
        %v1848 = vadd.f32 %v1550, %v1847
        %v1849 = vpop.f32.mrf.mxu0
        %1850 = vmatprep.mubr.f32.mxu0 %v1620
        %1851 = vmatmul.mubr.f32.gmra.mxu0 %v1489
        %v1852 = vpop.f32.mrf.mxu0
        %v1853 = vadd.f32 %v1550, %v1852
        %v1854 = vpop.f32.mrf.mxu0
        %1855 = vmatprep.mubr.f32.mxu0 %v1623
        %1856 = vmatmul.mubr.f32.gmra.mxu0 %v1491
        %v1857 = vpop.f32.mrf.mxu0
        %v1858 = vadd.f32 %v1550, %v1857
        %v1859 = vpop.f32.mrf.mxu0
        %1860 = vmatprep.mubr.f32.mxu0 %v1626
        %1861 = vmatmul.mubr.f32.gmra.mxu0 %v1493
        %v1862 = vpop.f32.mrf.mxu0
        %v1863 = vadd.f32 %v1550, %v1862
        %v1864 = vpop.f32.mrf.mxu0
        %1865 = vmatprep.mubr.f32.mxu0 %v1629
        %1866 = vmatmul.mubr.f32.gmra.mxu0 %v1495
        %v1867 = vpop.f32.mrf.mxu0
        %v1868 = vadd.f32 %v1550, %v1867
        %v1869 = vpop.f32.mrf.mxu0
        %1870 = vmatprep.mubr.f32.mxu0 %v1632
        %1871 = vmatmul.mubr.f32.gmra.mxu0 %v1497
        %v1872 = vpop.f32.mrf.mxu0
        %v1873 = vadd.f32 %v1550, %v1872
        %v1874 = vpop.f32.mrf.mxu0
        %1875 = vmatprep.mubr.f32.mxu0 %v1635
        %1876 = vmatmul.mubr.f32.gmra.mxu0 %v1499
        %v1877 = vpop.f32.mrf.mxu0
        %v1878 = vadd.f32 %v1550, %v1877
        %v1879 = vpop.f32.mrf.mxu0
        %1880 = vmatprep.mubr.f32.mxu0 %v1638
        %1881 = vmatmul.mubr.f32.gmra.mxu0 %v1501
        %v1882 = vpop.f32.mrf.mxu0
        %v1883 = vadd.f32 %v1550, %v1882
        %v1884 = vpop.f32.mrf.mxu0
        %1885 = vmatprep.mubr.f32.mxu0 %v1641
        %1886 = vmatmul.mubr.f32.gmra.mxu0 %v1503
        %v1887 = vpop.f32.mrf.mxu0
        %v1888 = vadd.f32 %v1550, %v1887
        %v1889 = vpop.f32.mrf.mxu0
        %1890 = vmatprep.mubr.f32.mxu0 %v1644
        %1891 = vmatmul.mubr.f32.gmra.mxu0 %v1505
        %v1892 = vpop.f32.mrf.mxu0
        %v1893 = vadd.f32 %v1550, %v1892
        %v1894 = vpop.f32.mrf.mxu0
        %1895 = vmatprep.mubr.f32.mxu0 %v1647
        %1896 = vmatmul.mubr.f32.gmra.mxu0 %v1507
        %v1897 = vpop.f32.mrf.mxu0
        %v1898 = vadd.f32 %v1550, %v1897
        %v1899 = vpop.f32.mrf.mxu0
        %1900 = vmatprep.mubr.f32.mxu0 %v1650
        %1901 = vmatmul.mubr.f32.gmra.mxu0 %v1509
        %v1902 = vpop.f32.mrf.mxu0
        %v1903 = vadd.f32 %v1550, %v1902
        %v1904 = vpop.f32.mrf.mxu0
        %1905 = vmatprep.mubr.f32.mxu0 %v1653
        %1906 = vmatmul.mubr.f32.gmra.mxu0 %v1511
        %v1907 = vpop.f32.mrf.mxu0
        %v1908 = vadd.f32 %v1550, %v1907
        %v1909 = vpop.f32.mrf.mxu0
        %1910 = vmatprep.mubr.f32.mxu0 %v1656
        %1911 = vmatmul.mubr.f32.gmra.mxu0 %v1513
        %v1912 = vpop.f32.mrf.mxu0
        %v1913 = vadd.f32 %v1550, %v1912
        %v1914 = vpop.f32.mrf.mxu0
        %1915 = vmatprep.mubr.f32.mxu0 %v1659
        %1916 = vmatmul.mubr.f32.gmra.mxu0 %v1515
        %v1917 = vpop.f32.mrf.mxu0
        %v1918 = vadd.f32 %v1550, %v1917
        %v1919 = vpop.f32.mrf.mxu0
        %1920 = vmatprep.mubr.f32.mxu0 %v1662
        %1921 = vmatmul.mubr.f32.gmra.mxu0 %v1517
        %v1922 = vpop.f32.mrf.mxu0
        %v1923 = vadd.f32 %v1550, %v1922
        %v1924 = vpop.f32.mrf.mxu0
        %1925 = vmatprep.mubr.f32.mxu0 %v1665
        %1926 = vmatmul.mubr.f32.gmra.mxu0 %v1519
        %v1927 = vpop.f32.mrf.mxu0
        %v1928 = vadd.f32 %v1550, %v1927
        %v1929 = vpop.f32.mrf.mxu0
        %1930 = vmatprep.mubr.f32.mxu0 %v1668
        %1931 = vmatmul.mubr.f32.gmra.mxu0 %v1521
        %v1932 = vpop.f32.mrf.mxu0
        %v1933 = vadd.f32 %v1550, %v1932
        %v1934 = vpop.f32.mrf.mxu0
        %1935 = vmatprep.mubr.f32.mxu0 %v1671
        %1936 = vmatmul.mubr.f32.gmra.mxu0 %v1523
        %v1937 = vpop.f32.mrf.mxu0
        %v1938 = vadd.f32 %v1550, %v1937
        %v1939 = vpop.f32.mrf.mxu0
        %1940 = vmatprep.mubr.f32.mxu0 %v1674
        %1941 = vmatmul.mubr.f32.gmra.mxu0 %v1525
        %v1942 = vpop.f32.mrf.mxu0
        %v1943 = vadd.f32 %v1550, %v1942
        %v1944 = vpop.f32.mrf.mxu0
        %1945 = vdwg.mxu0
        %v1946 = vtanh.pop %v1743
        %v1947 = vtanh.pop %v1748
        %v1948 = vtanh.pop %v1753
        %v1949 = vtanh.pop %v1758
        %v1950 = vtanh.pop %v1763
        %v1951 = vtanh.pop %v1768
        %v1952 = vtanh.pop %v1773
        %v1953 = vtanh.pop %v1778
        %v1954 = vtanh.pop %v1783
        %v1955 = vtanh.pop %v1788
        %v1956 = vtanh.pop %v1793
        %v1957 = vtanh.pop %v1798
        %v1958 = vtanh.pop %v1803
        %v1959 = vtanh.pop %v1808
        %v1960 = vtanh.pop %v1813
        %v1961 = vtanh.pop %v1818
        %v1962 = vtanh.pop %v1823
        %v1963 = vtanh.pop %v1828
        %v1964 = vtanh.pop %v1833
        %v1965 = vtanh.pop %v1838
        %v1966 = vtanh.pop %v1843
        %v1967 = vtanh.pop %v1848
        %v1968 = vtanh.pop %v1853
        %v1969 = vtanh.pop %v1858
        %v1970 = vtanh.pop %v1863
        %v1971 = vtanh.pop %v1868
        %v1972 = vtanh.pop %v1873
        %v1973 = vtanh.pop %v1878
        %v1974 = vtanh.pop %v1883
        %v1975 = vtanh.pop %v1888
        %v1976 = vtanh.pop %v1893
        %v1977 = vtanh.pop %v1898
        %v1978 = vtanh.pop %v1903
        %v1979 = vtanh.pop %v1908
        %v1980 = vtanh.pop %v1913
        %v1981 = vtanh.pop %v1918
        %v1982 = vtanh.pop %v1923
        %v1983 = vtanh.pop %v1928
        %v1984 = vtanh.pop %v1933
        %v1985 = vtanh.pop %v1938
        %v1986 = vtanh.pop %v1943
        %vm1992 = vcmask 1043456
        %v1993 = vrot.slane %v1950, 4
        %v1994 = vrot.slane %v1951, 4
        %v1995 = vsel %vm1992, %v1993, %v1994
        %v1996 = vrot.slane %v1952, 4
        %v1997 = vsel %vm1992, %v1994, %v1996
        %v1998 = vrot.slane %v1953, 4
        %v1999 = vsel %vm1992, %v1996, %v1998
        %v2000 = vrot.slane %v1954, 4
        %v2001 = vsel %vm1992, %v1998, %v2000
        %v2012 = vrot.slane %v1959, 4
        %v2013 = vrot.slane %v1960, 4
        %v2014 = vsel %vm1992, %v2012, %v2013
        %v2015 = vrot.slane %v1961, 4
        %v2016 = vsel %vm1992, %v2013, %v2015
        %v2017 = vrot.slane %v1962, 4
        %v2018 = vsel %vm1992, %v2015, %v2017
        %v2019 = vrot.slane %v1963, 4
        %v2020 = vsel %vm1992, %v2017, %v2019
        %v2031 = vrot.slane %v1968, 4
        %v2032 = vrot.slane %v1969, 4
        %v2033 = vsel %vm1992, %v2031, %v2032
        %v2034 = vrot.slane %v1970, 4
        %v2035 = vsel %vm1992, %v2032, %v2034
        %v2036 = vrot.slane %v1971, 4
        %v2037 = vsel %vm1992, %v2034, %v2036
        %v2038 = vrot.slane %v1972, 4
        %v2039 = vsel %vm1992, %v2036, %v2038
        %v2050 = vrot.slane %v1977, 4
        %v2051 = vrot.slane %v1978, 4
        %v2052 = vsel %vm1992, %v2050, %v2051
        %v2053 = vrot.slane %v1979, 4
        %v2054 = vsel %vm1992, %v2051, %v2053
        %v2055 = vrot.slane %v1980, 4
        %v2056 = vsel %vm1992, %v2053, %v2055
        %v2057 = vrot.slane %v1981, 4
        %v2058 = vsel %vm1992, %v2055, %v2057
        %v2064 = vld [vmem:[%s884] sm:$0xff]
        %v2065 = vld [vmem:[%s884 + $0x8] sm:$0xff]
        %v2066 = vld [vmem:[%s884 + $0x10] sm:$0xff]
        %v2067 = vld [vmem:[%s884 + $0x18] sm:$0xff]
        %v2068 = vld [vmem:[%s884 + $0x20] sm:$0xff]
        %v2069 = vld [vmem:[%s884 + $0x28] sm:$0xff]
        %v2070 = vld [vmem:[%s884 + $0x30] sm:$0xff]
        %v2071 = vld [vmem:[%s884 + $0x38] sm:$0xff]
        %v2072 = vld [vmem:[%s884 + $0x40] sm:$0xff]
        %v2073 = vld [vmem:[%s884 + $0x48] sm:$0xff]
        %v2074 = vld [vmem:[%s884 + $0x50] sm:$0xff]
        %v2075 = vld [vmem:[%s884 + $0x58] sm:$0xff]
        %v2076 = vld [vmem:[%s884 + $0x60] sm:$0xff]
        %v2077 = vld [vmem:[%s884 + $0x68] sm:$0xff]
        %v2078 = vld [vmem:[%s884 + $0x70] sm:$0xff]
        %v2079 = vld [vmem:[%s884 + $0x78] sm:$0xff]
        %v2080 = vld [vmem:[%s884 + $0x80] sm:$0xff]
        %v2081 = vld [vmem:[%s884 + $0x88] sm:$0xff]
        %v2082 = vld [vmem:[%s884 + $0x90] sm:$0xff]
        %v2083 = vld [vmem:[%s884 + $0x98] sm:$0xff]
        %v2084 = vld [vmem:[%s884 + $0xa0] sm:$0xff]
        %v2085 = vld [vmem:[%s884 + $0xa8] sm:$0xff]
        %v2086 = vld [vmem:[%s884 + $0xb0] sm:$0xff]
        %v2087 = vld [vmem:[%s884 + $0xb8] sm:$0xff]
        %v2088 = vld [vmem:[%s884 + $0xc0] sm:$0xff]
        %v2089 = vld [vmem:[%s884 + $0xc8] sm:$0xff]
        %v2090 = vld [vmem:[%s884 + $0xd0] sm:$0xff]
        %v2091 = vld [vmem:[%s884 + $0xd8] sm:$0xff]
        %v2092 = vld [vmem:[%s884 + $0xe0] sm:$0xff]
        %v2093 = vld [vmem:[%s884 + $0xe8] sm:$0xff]
        %v2094 = vld [vmem:[%s884 + $0xf0] sm:$0xff]
        %v2095 = vld [vmem:[%s884 + $0xf8] sm:$0xff]
        %v2096 = vld [vmem:[%s884 + $0x100] sm:$0xff]
        %v2097 = vld [vmem:[%s884 + $0x108] sm:$0xff]
        %v2098 = vld [vmem:[%s884 + $0x110] sm:$0xff]
        %v2099 = vld [vmem:[%s884 + $0x118] sm:$0xff]
        %v2100 = vld [vmem:[%s884 + $0x120] sm:$0xff]
        %v2101 = vld [vmem:[%s884 + $0x128] sm:$0xff]
        %v2102 = vld [vmem:[%s884 + $0x130] sm:$0xff]
        %v2103 = vld [vmem:[%s884 + $0x138] sm:$0xff]
        %v2104 = vld [vmem:[%s884 + $0x140] sm:$0xff]
        %v2105 = vld [vmem:[%s884 + $0x148] sm:$0xff]
        %v2106 = vld [vmem:[%s884 + $0x150] sm:$0xff]
        %v2107 = vld [vmem:[%s884 + $0x158] sm:$0xff]
        %v2108 = vld [vmem:[%s884 + $0x160] sm:$0xff]
        %v2109 = vld [vmem:[%s884 + $0x168] sm:$0xff]
        %v2110 = vld [vmem:[%s884 + $0x170] sm:$0xff]
        %v2111 = vld [vmem:[%s884 + $0x178] sm:$0xff]
        %v2112 = vld [vmem:[%s884 + $0x180] sm:$0xff]
        %v2113 = vld [vmem:[%s884 + $0x188] sm:$0xff]
        %v2114 = vld [vmem:[%s884 + $0x190] sm:$0xff]
        %v2115 = vld [vmem:[%s884 + $0x198] sm:$0xff]
        %v2116 = vld [vmem:[%s884 + $0x1a0] sm:$0xff]
        %v2117 = vld [vmem:[%s884 + $0x1a8] sm:$0xff]
        %v2118 = vld [vmem:[%s884 + $0x1b0] sm:$0xff]
        %v2119 = vld [vmem:[%s884 + $0x1b8] sm:$0xff]
        %v2120 = vld [vmem:[%s884 + $0x1c0] sm:$0xff]
        %v2121 = vld [vmem:[%s884 + $0x1c8] sm:$0xff]
        %v2122 = vld [vmem:[%s884 + $0x1d0] sm:$0xff]
        %v2123 = vld [vmem:[%s884 + $0x1d8] sm:$0xff]
        %v2124 = vld [vmem:[%s884 + $0x1e0] sm:$0xff]
        %v2125 = vld [vmem:[%s884 + $0x1e8] sm:$0xff]
        %v2126 = vld [vmem:[%s884 + $0x1f0] sm:$0xff]
        %v2127 = vld [vmem:[%s884 + $0x1f8] sm:$0xff]
        %v2128 = vld [vmem:[%s884 + $0x200] sm:$0xff]
        %v2129 = vld [vmem:[%s884 + $0x208] sm:$0xff]
        %v2130 = vld [vmem:[%s884 + $0x210] sm:$0xff]
        %v2131 = vld [vmem:[%s884 + $0x218] sm:$0xff]
        %v2132 = vld [vmem:[%s884 + $0x220] sm:$0xff]
        %v2133 = vld [vmem:[%s884 + $0x228] sm:$0xff]
        %v2134 = vld [vmem:[%s884 + $0x230] sm:$0xff]
        %v2135 = vld [vmem:[%s884 + $0x238] sm:$0xff]
        %v2136 = vld [vmem:[%s884 + $0x240] sm:$0xff]
        %v2137 = vld [vmem:[%s884 + $0x248] sm:$0xff]
        %v2138 = vld [vmem:[%s884 + $0x250] sm:$0xff]
        %v2139 = vld [vmem:[%s884 + $0x258] sm:$0xff]
        %v2140 = vld [vmem:[%s884 + $0x260] sm:$0xff]
        %v2141 = vld [vmem:[%s884 + $0x268] sm:$0xff]
        %v2142 = vld [vmem:[%s884 + $0x270] sm:$0xff]
        %v2143 = vld [vmem:[%s884 + $0x278] sm:$0xff]
        %v2144 = vld [vmem:[%s884 + $0x280] sm:$0xff]
        %v2145 = vld [vmem:[%s884 + $0x288] sm:$0xff]
        %v2146 = vld [vmem:[%s884 + $0x290] sm:$0xff]
        %v2147 = vld [vmem:[%s884 + $0x298] sm:$0xff]
        %v2148 = vld [vmem:[%s884 + $0x2a0] sm:$0xff]
        %v2149 = vld [vmem:[%s884 + $0x2a8] sm:$0xff]
        %v2150 = vld [vmem:[%s884 + $0x2b0] sm:$0xff]
        %v2151 = vld [vmem:[%s884 + $0x2b8] sm:$0xff]
        %v2152 = vld [vmem:[%s884 + $0x2c0] sm:$0xff]
        %v2153 = vld [vmem:[%s884 + $0x2c8] sm:$0xff]
        %v2154 = vld [vmem:[%s884 + $0x2d0] sm:$0xff]
        %v2155 = vld [vmem:[%s884 + $0x2d8] sm:$0xff]
        %v2156 = vld [vmem:[%s884 + $0x2e0] sm:$0xff]
        %v2157 = vld [vmem:[%s884 + $0x2e8] sm:$0xff]
        %v2158 = vld [vmem:[%s884 + $0x2f0] sm:$0xff]
        %v2159 = vld [vmem:[%s884 + $0x2f8] sm:$0xff]
        %v2160 = vld [vmem:[%s884 + $0x300] sm:$0xff]
        %v2161 = vld [vmem:[%s884 + $0x308] sm:$0xff]
        %v2162 = vld [vmem:[%s884 + $0x310] sm:$0xff]
        %v2163 = vld [vmem:[%s884 + $0x318] sm:$0xff]
        %v2164 = vld [vmem:[%s884 + $0x320] sm:$0xff]
        %v2165 = vld [vmem:[%s884 + $0x328] sm:$0xff]
        %v2166 = vld [vmem:[%s884 + $0x330] sm:$0xff]
        %v2167 = vld [vmem:[%s884 + $0x338] sm:$0xff]
        %v2168 = vld [vmem:[%s884 + $0x340] sm:$0xff]
        %v2169 = vld [vmem:[%s884 + $0x348] sm:$0xff]
        %v2170 = vld [vmem:[%s884 + $0x350] sm:$0xff]
        %v2171 = vld [vmem:[%s884 + $0x358] sm:$0xff]
        %v2172 = vld [vmem:[%s884 + $0x360] sm:$0xff]
        %v2173 = vld [vmem:[%s884 + $0x368] sm:$0xff]
        %v2174 = vld [vmem:[%s884 + $0x370] sm:$0xff]
        %v2175 = vld [vmem:[%s884 + $0x378] sm:$0xff]
        %v2176 = vld [vmem:[%s884 + $0x380] sm:$0xff]
        %v2177 = vld [vmem:[%s884 + $0x388] sm:$0xff]
        %v2178 = vld [vmem:[%s884 + $0x390] sm:$0xff]
        %v2179 = vld [vmem:[%s884 + $0x398] sm:$0xff]
        %v2180 = vld [vmem:[%s884 + $0x3a0] sm:$0xff]
        %v2181 = vld [vmem:[%s884 + $0x3a8] sm:$0xff]
        %v2182 = vld [vmem:[%s884 + $0x3b0] sm:$0xff]
        %v2183 = vld [vmem:[%s884 + $0x3b8] sm:$0xff]
        %v2184 = vld [vmem:[%s884 + $0x3c0] sm:$0xff]
        %v2185 = vld [vmem:[%s884 + $0x3c8] sm:$0xff]
        %v2186 = vld [vmem:[%s884 + $0x3d0] sm:$0xff]
        %v2187 = vld [vmem:[%s884 + $0x3d8] sm:$0xff]
        %v2188 = vld [vmem:[%s884 + $0x3e0] sm:$0xff]
        %v2189 = vld [vmem:[%s884 + $0x3e8] sm:$0xff]
        %v2190 = vld [vmem:[%s884 + $0x3f0] sm:$0xff]
        %v2191 = vld [vmem:[%s884 + $0x3f8] sm:$0xff]
        %v2192 = vld [vmem:[%s884 + $0x400] sm:$0xff]
        %v2193 = vld [vmem:[%s884 + $0x408] sm:$0xff]
        %v2194 = vld [vmem:[%s884 + $0x410] sm:$0xff]
        %v2195 = vld [vmem:[%s884 + $0x418] sm:$0xff]
        %v2196 = vld [vmem:[%s884 + $0x420] sm:$0xff]
        %v2197 = vld [vmem:[%s884 + $0x428] sm:$0xff]
        %v2198 = vld [vmem:[%s884 + $0x430] sm:$0xff]
        %v2199 = vld [vmem:[%s884 + $0x438] sm:$0xff]
        %v2200 = vld [vmem:[%s884 + $0x440] sm:$0xff]
        %v2201 = vld [vmem:[%s884 + $0x448] sm:$0xff]
        %v2202 = vld [vmem:[%s884 + $0x450] sm:$0xff]
        %v2203 = vld [vmem:[%s884 + $0x458] sm:$0xff]
        %v2204 = vld [vmem:[%s884 + $0x460] sm:$0xff]
        %v2205 = vld [vmem:[%s884 + $0x468] sm:$0xff]
        %v2206 = vld [vmem:[%s884 + $0x470] sm:$0xff]
        %v2207 = vld [vmem:[%s884 + $0x478] sm:$0xff]
        %v2208 = vld [vmem:[%s927] sm:$0x1]
        %v2210 = vlaneseq
        %v2211 = vshrl.u32 %v2210, 7
        %v2212 = vsub.s32 0, %v2211
        %v2213 = vrot.slane %v2208, %v2212
        %2215 = vmatprep.subr.mxu0 0.0
        %2216 = vmatpush1.msra.mxu0 %v2079
        %2217 = vmatprep.subr.mxu0 0.0
        %2218 = vmatpush1.msra.mxu0 %v2078
        %2219 = vmatprep.subr.mxu0 0.0
        %2220 = vmatpush1.msra.mxu0 %v2077
        %2221 = vmatprep.subr.mxu0 0.0
        %2222 = vmatpush1.msra.mxu0 %v2076
        %2223 = vmatprep.subr.mxu0 0.0
        %2224 = vmatpush1.msra.mxu0 %v2075
        %2225 = vmatprep.subr.mxu0 0.0
        %2226 = vmatpush1.msra.mxu0 %v2074
        %2227 = vmatprep.subr.mxu0 0.0
        %2228 = vmatpush1.msra.mxu0 %v2073
        %2229 = vmatprep.subr.mxu0 0.0
        %2230 = vmatpush1.msra.mxu0 %v2072
        %2231 = vmatprep.subr.mxu0 0.0
        %2232 = vmatpush1.msra.mxu0 %v2071
        %2233 = vmatprep.subr.mxu0 0.0
        %2234 = vmatpush1.msra.mxu0 %v2070
        %2235 = vmatprep.subr.mxu0 0.0
        %2236 = vmatpush1.msra.mxu0 %v2069
        %2237 = vmatprep.subr.mxu0 0.0
        %2238 = vmatpush1.msra.mxu0 %v2068
        %2239 = vmatprep.subr.mxu0 0.0
        %2240 = vmatpush1.msra.mxu0 %v2067
        %2241 = vmatprep.subr.mxu0 0.0
        %2242 = vmatpush1.msra.mxu0 %v2066
        %2243 = vmatprep.subr.mxu0 0.0
        %2244 = vmatpush1.msra.mxu0 %v2065
        %2245 = vmatprep.subr.mxu0 0.0
        %2246 = vmatpush1.msra.mxu0 %v2064
        %2247 = vmatprep.subr.mxu0 0.0
        %2248 = vmatpush2.msra.mxu0 %v2095
        %2249 = vmatprep.subr.mxu0 0.0
        %2250 = vmatpush2.msra.mxu0 %v2094
        %2251 = vmatprep.subr.mxu0 0.0
        %2252 = vmatpush2.msra.mxu0 %v2093
        %2253 = vmatprep.subr.mxu0 0.0
        %2254 = vmatpush2.msra.mxu0 %v2092
        %2255 = vmatprep.subr.mxu0 0.0
        %2256 = vmatpush2.msra.mxu0 %v2091
        %2257 = vmatprep.subr.mxu0 0.0
        %2258 = vmatpush2.msra.mxu0 %v2090
        %2259 = vmatprep.subr.mxu0 0.0
        %2260 = vmatpush2.msra.mxu0 %v2089
        %2261 = vmatprep.subr.mxu0 0.0
        %2262 = vmatpush2.msra.mxu0 %v2088
        %2263 = vmatprep.subr.mxu0 0.0
        %2264 = vmatpush2.msra.mxu0 %v2087
        %2265 = vmatprep.subr.mxu0 0.0
        %2266 = vmatpush2.msra.mxu0 %v2086
        %2267 = vmatprep.subr.mxu0 0.0
        %2268 = vmatpush2.msra.mxu0 %v2085
        %2269 = vmatprep.subr.mxu0 0.0
        %2270 = vmatpush2.msra.mxu0 %v2084
        %2271 = vmatprep.subr.mxu0 0.0
        %2272 = vmatpush2.msra.mxu0 %v2083
        %2273 = vmatprep.subr.mxu0 0.0
        %2274 = vmatpush2.msra.mxu0 %v2082
        %2275 = vmatprep.subr.mxu0 0.0
        %2276 = vmatpush2.msra.mxu0 %v2081
        %2277 = vmatprep.subr.mxu0 0.0
        %2278 = vmatpush2.msra.mxu0 %v2080
        %2279 = vmatprep.mubr.f32.mxu0 %v1995
        %2280 = vmatmul.mubr.f32.gmra.mxu0 %v1946
        %v2281 = vpop.f32.mrf.mxu0
        %v2282 = vadd.f32 %v2213, %v2281
        %v2283 = vpop.f32.mrf.mxu0
        %2284 = vmatprep.mubr.f32.mxu0 %v1997
        %2285 = vmatmul.mubr.f32.gmra.mxu0 %v1947
        %v2286 = vpop.f32.mrf.mxu0
        %v2287 = vadd.f32 %v2213, %v2286
        %v2288 = vpop.f32.mrf.mxu0
        %2289 = vmatprep.mubr.f32.mxu0 %v1999
        %2290 = vmatmul.mubr.f32.gmra.mxu0 %v1948
        %v2291 = vpop.f32.mrf.mxu0
        %v2292 = vadd.f32 %v2213, %v2291
        %v2293 = vpop.f32.mrf.mxu0
        %2294 = vmatprep.mubr.f32.mxu0 %v2001
        %2295 = vmatmul.mubr.f32.gmra.mxu0 %v1949
        %v2296 = vpop.f32.mrf.mxu0
        %v2297 = vadd.f32 %v2213, %v2296
        %v2298 = vpop.f32.mrf.mxu0
        %2299 = vmatprep.mubr.f32.mxu0 %v2000
        %2300 = vmatmul.mubr.f32.gmra.mxu0 %v1950
        %v2301 = vpop.f32.mrf.mxu0
        %v2302 = vadd.f32 %v2213, %v2301
        %v2303 = vpop.f32.mrf.mxu0
        %2304 = vdwg.mxu0
        %2305 = vmatprep.subr.mxu0 0.0
        %2306 = vmatpush1.msra.mxu0 %v2111
        %2307 = vmatprep.subr.mxu0 0.0
        %2308 = vmatpush1.msra.mxu0 %v2110
        %2309 = vmatprep.subr.mxu0 0.0
        %2310 = vmatpush1.msra.mxu0 %v2109
        %2311 = vmatprep.subr.mxu0 0.0
        %2312 = vmatpush1.msra.mxu0 %v2108
        %2313 = vmatprep.subr.mxu0 0.0
        %2314 = vmatpush1.msra.mxu0 %v2107
        %2315 = vmatprep.subr.mxu0 0.0
        %2316 = vmatpush1.msra.mxu0 %v2106
        %2317 = vmatprep.subr.mxu0 0.0
        %2318 = vmatpush1.msra.mxu0 %v2105
        %2319 = vmatprep.subr.mxu0 0.0
        %2320 = vmatpush1.msra.mxu0 %v2104
        %2321 = vmatprep.subr.mxu0 0.0
        %2322 = vmatpush1.msra.mxu0 %v2103
        %2323 = vmatprep.subr.mxu0 0.0
        %2324 = vmatpush1.msra.mxu0 %v2102
        %2325 = vmatprep.subr.mxu0 0.0
        %2326 = vmatpush1.msra.mxu0 %v2101
        %2327 = vmatprep.subr.mxu0 0.0
        %2328 = vmatpush1.msra.mxu0 %v2100
        %2329 = vmatprep.subr.mxu0 0.0
        %2330 = vmatpush1.msra.mxu0 %v2099
        %2331 = vmatprep.subr.mxu0 0.0
        %2332 = vmatpush1.msra.mxu0 %v2098
        %2333 = vmatprep.subr.mxu0 0.0
        %2334 = vmatpush1.msra.mxu0 %v2097
        %2335 = vmatprep.subr.mxu0 0.0
        %2336 = vmatpush1.msra.mxu0 %v2096
        %2337 = vmatprep.subr.mxu0 0.0
        %2338 = vmatpush2.msra.mxu0 %v2127
        %2339 = vmatprep.subr.mxu0 0.0
        %2340 = vmatpush2.msra.mxu0 %v2126
        %2341 = vmatprep.subr.mxu0 0.0
        %2342 = vmatpush2.msra.mxu0 %v2125
        %2343 = vmatprep.subr.mxu0 0.0
        %2344 = vmatpush2.msra.mxu0 %v2124
        %2345 = vmatprep.subr.mxu0 0.0
        %2346 = vmatpush2.msra.mxu0 %v2123
        %2347 = vmatprep.subr.mxu0 0.0
        %2348 = vmatpush2.msra.mxu0 %v2122
        %2349 = vmatprep.subr.mxu0 0.0
        %2350 = vmatpush2.msra.mxu0 %v2121
        %2351 = vmatprep.subr.mxu0 0.0
        %2352 = vmatpush2.msra.mxu0 %v2120
        %2353 = vmatprep.subr.mxu0 0.0
        %2354 = vmatpush2.msra.mxu0 %v2119
        %2355 = vmatprep.subr.mxu0 0.0
        %2356 = vmatpush2.msra.mxu0 %v2118
        %2357 = vmatprep.subr.mxu0 0.0
        %2358 = vmatpush2.msra.mxu0 %v2117
        %2359 = vmatprep.subr.mxu0 0.0
        %2360 = vmatpush2.msra.mxu0 %v2116
        %2361 = vmatprep.subr.mxu0 0.0
        %2362 = vmatpush2.msra.mxu0 %v2115
        %2363 = vmatprep.subr.mxu0 0.0
        %2364 = vmatpush2.msra.mxu0 %v2114
        %2365 = vmatprep.subr.mxu0 0.0
        %2366 = vmatpush2.msra.mxu0 %v2113
        %2367 = vmatprep.subr.mxu0 0.0
        %2368 = vmatpush2.msra.mxu0 %v2112
        %2369 = vmatprep.mubr.f32.mxu0 %v2014
        %2370 = vmatmul.mubr.f32.gmra.mxu0 %v1955
        %v2371 = vpop.f32.mrf.mxu0
        %v2372 = vadd.f32 %v2282, %v2371
        %v2373 = vpop.f32.mrf.mxu0
        %2374 = vmatprep.mubr.f32.mxu0 %v2016
        %2375 = vmatmul.mubr.f32.gmra.mxu0 %v1956
        %v2376 = vpop.f32.mrf.mxu0
        %v2377 = vadd.f32 %v2287, %v2376
        %v2378 = vpop.f32.mrf.mxu0
        %2379 = vmatprep.mubr.f32.mxu0 %v2018
        %2380 = vmatmul.mubr.f32.gmra.mxu0 %v1957
        %v2381 = vpop.f32.mrf.mxu0
        %v2382 = vadd.f32 %v2292, %v2381
        %v2383 = vpop.f32.mrf.mxu0
        %2384 = vmatprep.mubr.f32.mxu0 %v2020
        %2385 = vmatmul.mubr.f32.gmra.mxu0 %v1958
        %v2386 = vpop.f32.mrf.mxu0
        %v2387 = vadd.f32 %v2297, %v2386
        %v2388 = vpop.f32.mrf.mxu0
        %2389 = vmatprep.mubr.f32.mxu0 %v2019
        %2390 = vmatmul.mubr.f32.gmra.mxu0 %v1959
        %v2391 = vpop.f32.mrf.mxu0
        %v2392 = vadd.f32 %v2302, %v2391
        %v2393 = vpop.f32.mrf.mxu0
        %2394 = vdwg.mxu0
        %2395 = vmatprep.subr.mxu0 0.0
        %2396 = vmatpush1.msra.mxu0 %v2143
        %2397 = vmatprep.subr.mxu0 0.0
        %2398 = vmatpush1.msra.mxu0 %v2142
        %2399 = vmatprep.subr.mxu0 0.0
        %2400 = vmatpush1.msra.mxu0 %v2141
        %2401 = vmatprep.subr.mxu0 0.0
        %2402 = vmatpush1.msra.mxu0 %v2140
        %2403 = vmatprep.subr.mxu0 0.0
        %2404 = vmatpush1.msra.mxu0 %v2139
        %2405 = vmatprep.subr.mxu0 0.0
        %2406 = vmatpush1.msra.mxu0 %v2138
        %2407 = vmatprep.subr.mxu0 0.0
        %2408 = vmatpush1.msra.mxu0 %v2137
        %2409 = vmatprep.subr.mxu0 0.0
        %2410 = vmatpush1.msra.mxu0 %v2136
        %2411 = vmatprep.subr.mxu0 0.0
        %2412 = vmatpush1.msra.mxu0 %v2135
        %2413 = vmatprep.subr.mxu0 0.0
        %2414 = vmatpush1.msra.mxu0 %v2134
        %2415 = vmatprep.subr.mxu0 0.0
        %2416 = vmatpush1.msra.mxu0 %v2133
        %2417 = vmatprep.subr.mxu0 0.0
        %2418 = vmatpush1.msra.mxu0 %v2132
        %2419 = vmatprep.subr.mxu0 0.0
        %2420 = vmatpush1.msra.mxu0 %v2131
        %2421 = vmatprep.subr.mxu0 0.0
        %2422 = vmatpush1.msra.mxu0 %v2130
        %2423 = vmatprep.subr.mxu0 0.0
        %2424 = vmatpush1.msra.mxu0 %v2129
        %2425 = vmatprep.subr.mxu0 0.0
        %2426 = vmatpush1.msra.mxu0 %v2128
        %2427 = vmatprep.subr.mxu0 0.0
        %2428 = vmatpush2.msra.mxu0 %v2159
        %2429 = vmatprep.subr.mxu0 0.0
        %2430 = vmatpush2.msra.mxu0 %v2158
        %2431 = vmatprep.subr.mxu0 0.0
        %2432 = vmatpush2.msra.mxu0 %v2157
        %2433 = vmatprep.subr.mxu0 0.0
        %2434 = vmatpush2.msra.mxu0 %v2156
        %2435 = vmatprep.subr.mxu0 0.0
        %2436 = vmatpush2.msra.mxu0 %v2155
        %2437 = vmatprep.subr.mxu0 0.0
        %2438 = vmatpush2.msra.mxu0 %v2154
        %2439 = vmatprep.subr.mxu0 0.0
        %2440 = vmatpush2.msra.mxu0 %v2153
        %2441 = vmatprep.subr.mxu0 0.0
        %2442 = vmatpush2.msra.mxu0 %v2152
        %2443 = vmatprep.subr.mxu0 0.0
        %2444 = vmatpush2.msra.mxu0 %v2151
        %2445 = vmatprep.subr.mxu0 0.0
        %2446 = vmatpush2.msra.mxu0 %v2150
        %2447 = vmatprep.subr.mxu0 0.0
        %2448 = vmatpush2.msra.mxu0 %v2149
        %2449 = vmatprep.subr.mxu0 0.0
        %2450 = vmatpush2.msra.mxu0 %v2148
        %2451 = vmatprep.subr.mxu0 0.0
        %2452 = vmatpush2.msra.mxu0 %v2147
        %2453 = vmatprep.subr.mxu0 0.0
        %2454 = vmatpush2.msra.mxu0 %v2146
        %2455 = vmatprep.subr.mxu0 0.0
        %2456 = vmatpush2.msra.mxu0 %v2145
        %2457 = vmatprep.subr.mxu0 0.0
        %2458 = vmatpush2.msra.mxu0 %v2144
        %2459 = vmatprep.mubr.f32.mxu0 %v2033
        %2460 = vmatmul.mubr.f32.gmra.mxu0 %v1964
        %v2461 = vpop.f32.mrf.mxu0
        %v2462 = vadd.f32 %v2372, %v2461
        %v2463 = vpop.f32.mrf.mxu0
        %2464 = vmatprep.mubr.f32.mxu0 %v2035
        %2465 = vmatmul.mubr.f32.gmra.mxu0 %v1965
        %v2466 = vpop.f32.mrf.mxu0
        %v2467 = vadd.f32 %v2377, %v2466
        %v2468 = vpop.f32.mrf.mxu0
        %2469 = vmatprep.mubr.f32.mxu0 %v2037
        %2470 = vmatmul.mubr.f32.gmra.mxu0 %v1966
        %v2471 = vpop.f32.mrf.mxu0
        %v2472 = vadd.f32 %v2382, %v2471
        %v2473 = vpop.f32.mrf.mxu0
        %2474 = vmatprep.mubr.f32.mxu0 %v2039
        %2475 = vmatmul.mubr.f32.gmra.mxu0 %v1967
        %v2476 = vpop.f32.mrf.mxu0
        %v2477 = vadd.f32 %v2387, %v2476
        %v2478 = vpop.f32.mrf.mxu0
        %2479 = vmatprep.mubr.f32.mxu0 %v2038
        %2480 = vmatmul.mubr.f32.gmra.mxu0 %v1968
        %v2481 = vpop.f32.mrf.mxu0
        %v2482 = vadd.f32 %v2392, %v2481
        %v2483 = vpop.f32.mrf.mxu0
        %2484 = vdwg.mxu0
        %2485 = vmatprep.subr.mxu0 0.0
        %2486 = vmatpush1.msra.mxu0 %v2175
        %2487 = vmatprep.subr.mxu0 0.0
        %2488 = vmatpush1.msra.mxu0 %v2174
        %2489 = vmatprep.subr.mxu0 0.0
        %2490 = vmatpush1.msra.mxu0 %v2173
        %2491 = vmatprep.subr.mxu0 0.0
        %2492 = vmatpush1.msra.mxu0 %v2172
        %2493 = vmatprep.subr.mxu0 0.0
        %2494 = vmatpush1.msra.mxu0 %v2171
        %2495 = vmatprep.subr.mxu0 0.0
        %2496 = vmatpush1.msra.mxu0 %v2170
        %2497 = vmatprep.subr.mxu0 0.0
        %2498 = vmatpush1.msra.mxu0 %v2169
        %2499 = vmatprep.subr.mxu0 0.0
        %2500 = vmatpush1.msra.mxu0 %v2168
        %2501 = vmatprep.subr.mxu0 0.0
        %2502 = vmatpush1.msra.mxu0 %v2167
        %2503 = vmatprep.subr.mxu0 0.0
        %2504 = vmatpush1.msra.mxu0 %v2166
        %2505 = vmatprep.subr.mxu0 0.0
        %2506 = vmatpush1.msra.mxu0 %v2165
        %2507 = vmatprep.subr.mxu0 0.0
        %2508 = vmatpush1.msra.mxu0 %v2164
        %2509 = vmatprep.subr.mxu0 0.0
        %2510 = vmatpush1.msra.mxu0 %v2163
        %2511 = vmatprep.subr.mxu0 0.0
        %2512 = vmatpush1.msra.mxu0 %v2162
        %2513 = vmatprep.subr.mxu0 0.0
        %2514 = vmatpush1.msra.mxu0 %v2161
        %2515 = vmatprep.subr.mxu0 0.0
        %2516 = vmatpush1.msra.mxu0 %v2160
        %2517 = vmatprep.subr.mxu0 0.0
        %2518 = vmatpush2.msra.mxu0 %v2191
        %2519 = vmatprep.subr.mxu0 0.0
        %2520 = vmatpush2.msra.mxu0 %v2190
        %2521 = vmatprep.subr.mxu0 0.0
        %2522 = vmatpush2.msra.mxu0 %v2189
        %2523 = vmatprep.subr.mxu0 0.0
        %2524 = vmatpush2.msra.mxu0 %v2188
        %2525 = vmatprep.subr.mxu0 0.0
        %2526 = vmatpush2.msra.mxu0 %v2187
        %2527 = vmatprep.subr.mxu0 0.0
        %2528 = vmatpush2.msra.mxu0 %v2186
        %2529 = vmatprep.subr.mxu0 0.0
        %2530 = vmatpush2.msra.mxu0 %v2185
        %2531 = vmatprep.subr.mxu0 0.0
        %2532 = vmatpush2.msra.mxu0 %v2184
        %2533 = vmatprep.subr.mxu0 0.0
        %2534 = vmatpush2.msra.mxu0 %v2183
        %2535 = vmatprep.subr.mxu0 0.0
        %2536 = vmatpush2.msra.mxu0 %v2182
        %2537 = vmatprep.subr.mxu0 0.0
        %2538 = vmatpush2.msra.mxu0 %v2181
        %2539 = vmatprep.subr.mxu0 0.0
        %2540 = vmatpush2.msra.mxu0 %v2180
        %2541 = vmatprep.subr.mxu0 0.0
        %2542 = vmatpush2.msra.mxu0 %v2179
        %2543 = vmatprep.subr.mxu0 0.0
        %2544 = vmatpush2.msra.mxu0 %v2178
        %2545 = vmatprep.subr.mxu0 0.0
        %2546 = vmatpush2.msra.mxu0 %v2177
        %2547 = vmatprep.subr.mxu0 0.0
        %2548 = vmatpush2.msra.mxu0 %v2176
        %2549 = vmatprep.mubr.f32.mxu0 %v2052
        %2550 = vmatmul.mubr.f32.gmra.mxu0 %v1973
        %v2551 = vpop.f32.mrf.mxu0
        %v2552 = vadd.f32 %v2462, %v2551
        %v2553 = vpop.f32.mrf.mxu0
        %2554 = vmatprep.mubr.f32.mxu0 %v2054
        %2555 = vmatmul.mubr.f32.gmra.mxu0 %v1974
        %v2556 = vpop.f32.mrf.mxu0
        %v2557 = vadd.f32 %v2467, %v2556
        %v2558 = vpop.f32.mrf.mxu0
        %2559 = vmatprep.mubr.f32.mxu0 %v2056
        %2560 = vmatmul.mubr.f32.gmra.mxu0 %v1975
        %v2561 = vpop.f32.mrf.mxu0
        %v2562 = vadd.f32 %v2472, %v2561
        %v2563 = vpop.f32.mrf.mxu0
        %2564 = vmatprep.mubr.f32.mxu0 %v2058
        %2565 = vmatmul.mubr.f32.gmra.mxu0 %v1976
        %v2566 = vpop.f32.mrf.mxu0
        %v2567 = vadd.f32 %v2477, %v2566
        %v2568 = vpop.f32.mrf.mxu0
        %2569 = vmatprep.mubr.f32.mxu0 %v2057
        %2570 = vmatmul.mubr.f32.gmra.mxu0 %v1977
        %v2571 = vpop.f32.mrf.mxu0
        %v2572 = vadd.f32 %v2482, %v2571
        %v2573 = vpop.f32.mrf.mxu0
        %2574 = vdwg.mxu0
        %2575 = vmatprep.subr.mxu0 0.0
        %2576 = vmatpush1.msra.mxu0 %v2207
        %2577 = vmatprep.subr.mxu0 0.0
        %2578 = vmatpush1.msra.mxu0 %v2206
        %2579 = vmatprep.subr.mxu0 0.0
        %2580 = vmatpush1.msra.mxu0 %v2205
        %2581 = vmatprep.subr.mxu0 0.0
        %2582 = vmatpush1.msra.mxu0 %v2204
        %2583 = vmatprep.subr.mxu0 0.0
        %2584 = vmatpush1.msra.mxu0 %v2203
        %2585 = vmatprep.subr.mxu0 0.0
        %2586 = vmatpush1.msra.mxu0 %v2202
        %2587 = vmatprep.subr.mxu0 0.0
        %2588 = vmatpush1.msra.mxu0 %v2201
        %2589 = vmatprep.subr.mxu0 0.0
        %2590 = vmatpush1.msra.mxu0 %v2200
        %2591 = vmatprep.subr.mxu0 0.0
        %2592 = vmatpush1.msra.mxu0 %v2199
        %2593 = vmatprep.subr.mxu0 0.0
        %2594 = vmatpush1.msra.mxu0 %v2198
        %2595 = vmatprep.subr.mxu0 0.0
        %2596 = vmatpush1.msra.mxu0 %v2197
        %2597 = vmatprep.subr.mxu0 0.0
        %2598 = vmatpush1.msra.mxu0 %v2196
        %2599 = vmatprep.subr.mxu0 0.0
        %2600 = vmatpush1.msra.mxu0 %v2195
        %2601 = vmatprep.subr.mxu0 0.0
        %2602 = vmatpush1.msra.mxu0 %v2194
        %2603 = vmatprep.subr.mxu0 0.0
        %2604 = vmatpush1.msra.mxu0 %v2193
        %2605 = vmatprep.subr.mxu0 0.0
        %2606 = vmatpush1.msra.mxu0 %v2192
        %2607 = vmatprep.subr.mxu0 0.0
        %2608 = vmatpush2.msra.mxu0 0.0
        %2609 = vmatprep.subr.mxu0 0.0
        %2610 = vmatpush2.msra.mxu0 0.0
        %2611 = vmatprep.subr.mxu0 0.0
        %2612 = vmatpush2.msra.mxu0 0.0
        %2613 = vmatprep.subr.mxu0 0.0
        %2614 = vmatpush2.msra.mxu0 0.0
        %2615 = vmatprep.subr.mxu0 0.0
        %2616 = vmatpush2.msra.mxu0 0.0
        %2617 = vmatprep.subr.mxu0 0.0
        %2618 = vmatpush2.msra.mxu0 0.0
        %2619 = vmatprep.subr.mxu0 0.0
        %2620 = vmatpush2.msra.mxu0 0.0
        %2621 = vmatprep.subr.mxu0 0.0
        %2622 = vmatpush2.msra.mxu0 0.0
        %2623 = vmatprep.subr.mxu0 0.0
        %2624 = vmatpush2.msra.mxu0 0.0
        %2625 = vmatprep.subr.mxu0 0.0
        %2626 = vmatpush2.msra.mxu0 0.0
        %2627 = vmatprep.subr.mxu0 0.0
        %2628 = vmatpush2.msra.mxu0 0.0
        %2629 = vmatprep.subr.mxu0 0.0
        %2630 = vmatpush2.msra.mxu0 0.0
        %2631 = vmatprep.subr.mxu0 0.0
        %2632 = vmatpush2.msra.mxu0 0.0
        %2633 = vmatprep.subr.mxu0 0.0
        %2634 = vmatpush2.msra.mxu0 0.0
        %2635 = vmatprep.subr.mxu0 0.0
        %2636 = vmatpush2.msra.mxu0 0.0
        %2637 = vmatprep.subr.mxu0 0.0
        %2638 = vmatpush2.msra.mxu0 0.0
        %2639 = vmatprep.mubr.f32.mxu0 0.0
        %2640 = vmatmul.mubr.f32.gmra.mxu0 %v1982
        %v2641 = vpop.f32.mrf.mxu0
        %v2642 = vadd.f32 %v2552, %v2641
        %v2643 = vpop.f32.mrf.mxu0
        %2644 = vmatprep.mubr.f32.mxu0 0.0
        %2645 = vmatmul.mubr.f32.gmra.mxu0 %v1983
        %v2646 = vpop.f32.mrf.mxu0
        %v2647 = vadd.f32 %v2557, %v2646
        %v2648 = vpop.f32.mrf.mxu0
        %2649 = vmatprep.mubr.f32.mxu0 0.0
        %2650 = vmatmul.mubr.f32.gmra.mxu0 %v1984
        %v2651 = vpop.f32.mrf.mxu0
        %v2652 = vadd.f32 %v2562, %v2651
        %v2653 = vpop.f32.mrf.mxu0
        %2654 = vmatprep.mubr.f32.mxu0 0.0
        %2655 = vmatmul.mubr.f32.gmra.mxu0 %v1985
        %v2656 = vpop.f32.mrf.mxu0
        %v2657 = vadd.f32 %v2567, %v2656
        %v2658 = vpop.f32.mrf.mxu0
        %2659 = vmatprep.mubr.f32.mxu0 0.0
        %2660 = vmatmul.mubr.f32.gmra.mxu0 %v1986
        %v2661 = vpop.f32.mrf.mxu0
        %v2662 = vadd.f32 %v2572, %v2661
        %v2663 = vpop.f32.mrf.mxu0
        %2664 = vdwg.mxu0
        %v2665 = vtanh.pop %v2642
        %v2666 = vtanh.pop %v2647
        %v2667 = vtanh.pop %v2652
        %v2668 = vtanh.pop %v2657
        %v2669 = vtanh.pop %v2662
        %2670 = vst [vmem:[%s919] sm:$0xff] %v2665
        %2671 = vst [vmem:[%s919 + $0x8] sm:$0xff] %v2666
        %2672 = vst [vmem:[%s919 + $0x10] sm:$0xff] %v2667
        %2673 = vst [vmem:[%s919 + $0x18] sm:$0xff] %v2668
        %2674 = vst [vmem:[%s919 + $0x20] sm:$0xf] %v2669
        %s2675 = sand.u32 %s202, 1
        %s2676 = sand.u32 %s202, 1
        %s2677 = smul.addr %s2676, 40
        %s2678 = scalar_lea.vmem [#allocation3], %s2677
        // Predicated region
        $region87: #{model_tanh_forward.1} parent=81 // pred_check
          %p2679 = pneg %p212
        $region88: #{model_tanh_forward.1} parent=81 // pred_check_branch
          %2681 = sbr.rel (%p2679) target = $region90
        $region89: #{model_tanh_forward.1} parent=81 // pred_region
          %s2682 = smul.addr %s23, 20
          %s2683 = sadd.s32 %s22, %s2682
          %s2684 = smul.addr %s2683, 8
          %s2685 = scalar_lea.vmem %s7, %s2684
          // Predicated region
          $region91: #{model_tanh_forward.1} parent=89 // pred_check
            _
          $region92: #{model_tanh_forward.1} parent=89 // pred_check_branch
            %2687 = sbr.rel (0) target = $region94
          $region93: #{model_tanh_forward.1} parent=89 // pred_region
            // Predicated region
            $region95: #{model_tanh_forward.1} parent=93 // pred_check
              _
            $region96: #{model_tanh_forward.1} parent=93 // pred_check_branch
              %2689 = sbr.rel (0) target = $region98
            $region97: #{model_tanh_forward.1} parent=93 // pred_region
              // Predicated region
              $region110: #{model_tanh_forward.1} parent=97 // pred_check
                _
              $region111: #{model_tanh_forward.1} parent=97 // pred_check_branch
                %2713 = sbr.rel (0) target = $region113
              $region112: #{model_tanh_forward.1} parent=97 // pred_region
                loop: start=0, step=1, limit=1
                $region114: #{model_tanh_forward.1} parent=112 // loop_pre_header
                  _
                $region115: #{model_tanh_forward.1} parent=112 // loop_header
                  %s2715 = sphi 0, %s2719
                  %p2716 = scmp.ge.s32.totalorder %s2715, 1
                  %s2720 = sphi %s2678, %s2678
                  %s2721 = sphi %s2685, %s2685
                $region116: #{model_tanh_forward.1} parent=112 // loop_header_branch
                  %2718 = sbr.rel (%p2716) target = $region120
                $region117: #{model_tanh_forward.1} parent=112 // loop_body
                  %v2722 = vld [vmem:[%s2720] sm:$0xff]
                  %2723 = vst [vmem:[%s2721] sm:$0xff] %v2722
                  %v2724 = vld [vmem:[%s2720 + $0x8] sm:$0xff]
                  %2725 = vst [vmem:[%s2721 + $0x20] sm:$0xff] %v2724
                  %v2726 = vld [vmem:[%s2720 + $0x10] sm:$0xff]
                  %2727 = vst [vmem:[%s2721 + $0x40] sm:$0xff] %v2726
                  %v2728 = vld [vmem:[%s2720 + $0x18] sm:$0xff]
                  %2729 = vst [vmem:[%s2721 + $0x60] sm:$0xff] %v2728
                  %v2730 = vld [vmem:[%s2720 + $0x20] sm:$0xff]
                  %2731 = vst [vmem:[%s2721 + $0x80] sm:$0xff] %v2730
                $region118: #{model_tanh_forward.1} parent=112 // loop_footer
                  %s2719 = sadd.s32 1, %s2715
                $region119: #{model_tanh_forward.1} parent=112 // loop_footer_branch
                  %2714 = sbr.rel target = $region115
                $region120: #{model_tanh_forward.1} parent=112 // loop_exit
                  _
              $region113: #{model_tanh_forward.1} parent=97 // pred_fallthru
                _
              // Predicated region
              $region121: #{model_tanh_forward.1} parent=97 // pred_check
                _
              $region122: #{model_tanh_forward.1} parent=97 // pred_check_branch
                %2733 = sbr.rel target = $region124
              $region123: #{model_tanh_forward.1} parent=97 // pred_region
                _
              $region124: #{model_tanh_forward.1} parent=97 // pred_fallthru
                _
            $region98: #{model_tanh_forward.1} parent=93 // pred_fallthru
              _
            // Predicated region
            $region99: #{model_tanh_forward.1} parent=93 // pred_check
              _
            $region100: #{model_tanh_forward.1} parent=93 // pred_check_branch
              %2691 = sbr.rel target = $region102
            $region101: #{model_tanh_forward.1} parent=93 // pred_region
              %s2693 = ssub.s32 256, 1
              loop: start=0, step=1, limit=1
              $region103: #{model_tanh_forward.1} parent=101 // loop_pre_header
                _
              $region104: #{model_tanh_forward.1} parent=101 // loop_header
                %s2695 = sphi 0, %s2699
                %p2696 = scmp.ge.s32.totalorder %s2695, 1
                %s2700 = sphi %s2678, %s2678
                %s2701 = sphi %s2685, %s2685
              $region105: #{model_tanh_forward.1} parent=101 // loop_header_branch
                %2698 = sbr.rel (%p2696) target = $region109
              $region106: #{model_tanh_forward.1} parent=101 // loop_body
                %v2702 = vld [vmem:[%s2700] sm:%s2693]
                %2703 = vst [vmem:[%s2701] sm:%s2693] %v2702
                %v2704 = vld [vmem:[%s2700 + $0x8] sm:%s2693]
                %2705 = vst [vmem:[%s2701 + $0x20] sm:%s2693] %v2704
                %v2706 = vld [vmem:[%s2700 + $0x10] sm:%s2693]
                %2707 = vst [vmem:[%s2701 + $0x40] sm:%s2693] %v2706
                %v2708 = vld [vmem:[%s2700 + $0x18] sm:%s2693]
                %2709 = vst [vmem:[%s2701 + $0x60] sm:%s2693] %v2708
                %v2710 = vld [vmem:[%s2700 + $0x20] sm:%s2693]
                %2711 = vst [vmem:[%s2701 + $0x80] sm:%s2693] %v2710
              $region107: #{model_tanh_forward.1} parent=101 // loop_footer
                %s2699 = sadd.s32 1, %s2695
              $region108: #{model_tanh_forward.1} parent=101 // loop_footer_branch
                %2694 = sbr.rel target = $region104
              $region109: #{model_tanh_forward.1} parent=101 // loop_exit
                _
            $region102: #{model_tanh_forward.1} parent=93 // pred_fallthru
              _
          $region94: #{model_tanh_forward.1} parent=89 // pred_fallthru
            _
          %2734 = vnop
        $region90: #{model_tanh_forward.1} parent=81 // pred_fallthru
          _
      $region82: #{model_tanh_forward.1} parent=5 // pred_fallthru
        _
      %p2735 = scmp.le.s32.totalorder 2, %s13
      // Predicated region
      $region125: #{model_tanh_forward.1} parent=5 // pred_check
        %p2736 = pneg %p2735
      $region126: #{model_tanh_forward.1} parent=5 // pred_check_branch
        %2738 = sbr.rel (%p2736) target = $region128
      $region127: #{model_tanh_forward.1} parent=5 // pred_region
        %s2739 = ssub.s32 %s13, 2
        // Predicated region
        $region129: #{model_tanh_forward.1} parent=127 // pred_check
          %p2740 = pneg %p218
        $region130: #{model_tanh_forward.1} parent=127 // pred_check_branch
          %2742 = sbr.rel (%p2740) target = $region132
        $region131: #{model_tanh_forward.1} parent=127 // pred_region
          %s2743 = sand.u32 %s203, 1
          %s2744 = sand.u32 %s203, 1
          %s2745 = smul.addr %s2744, 40
          %s2746 = scalar_lea.vmem [#allocation3], %s2745
        $region132: #{model_tanh_forward.1} parent=127 // pred_fallthru
          _
      $region128: #{model_tanh_forward.1} parent=5 // pred_fallthru
        _
    $region6: #{model_tanh_forward.1} parent=1 // loop_footer
      %s17 = sadd.s32 1, %s13
    $region7: #{model_tanh_forward.1} parent=1 // loop_footer_branch
      %12 = sbr.rel target = $region3
    $region8: #{model_tanh_forward.1} parent=1 // loop_exit
      _

</llo_original>
